<compile_context>
chip_gen: v7x
topology: tpu7x:2x2x1
jax: 0.10.0
libtpu: 0.0.40
codegen_flags: <defaults>
</compile_context>

<pallas_src>
import functools

import jax
import jax.numpy as jnp
from jax import lax
from jax.experimental import pallas as pl
from jax.experimental.pallas import tpu as pltpu

LANE = 128  # lane width: node dim and all channel dims padded to this


def _round_up(v, m):
    return max(m, ((v + m - 1) // m) * m)


def _pad_to(arr, shape):
    pads = [(0, t - s) for s, t in zip(arr.shape, shape)]
    return jnp.pad(arr, pads)


def _l2_normalize(x):
    # Matches F.normalize(p=2, dim=-1, eps=1e-12): x / max(||x||, 1e-12).
    # rsqrt goes to the EUP slot, avoiding VPU sqrt + divide.
    sumsq = jnp.sum(x * x, axis=-1, keepdims=True)
    inv = lax.rsqrt(jnp.maximum(sumsq, 1e-24))
    return x * inv


def _fused_sage_decoder_kernel(a_ref, x_ref, wl1_ref, wr1_ref, b1_ref,
                               wl2_ref, wr2_ref, b2_ref, o_ref, h_ref, *, tm):
    """grid = (layer, row_tile).

    a_ref : (TM, n_p) bf16 row tile of the row-normalized adjacency.
    x_ref : (n_p, c_in_p) bf16, resident (constant block index).
    h_ref : (n_p, c_hid_p) bf16 persistent VMEM scratch holding layer-1 output.
    """
    layer = pl.program_id(0)
    row = pl.multiple_of(pl.program_id(1) * tm, tm)
    a = a_ref[...]  # (TM, n_p) bf16

    @pl.when(layer == 0)
    def _():
        # mean aggregation over all neighbours (full X as the K operand)
        agg = jnp.dot(a, x_ref[...], preferred_element_type=jnp.float32)
        x_t = x_ref[pl.ds(row, tm), :]
        h = (jnp.dot(agg.astype(jnp.bfloat16), wl1_ref[...],
                     preferred_element_type=jnp.float32)
             + jnp.dot(x_t, wr1_ref[...], preferred_element_type=jnp.float32)
             + b1_ref[...])
        h = _l2_normalize(h)
        h_ref[pl.ds(row, tm), :] = h.astype(h_ref.dtype)
        # Defined placeholder; the layer-1 pass over this block overwrites it.
        o_ref[...] = jnp.zeros_like(o_ref)

    @pl.when(layer == 1)
    def _():
        h_full = h_ref[...]  # (n_p, c_hid_p) bf16, fully written by layer 0
        agg = jnp.dot(a, h_full, preferred_element_type=jnp.float32)
        h_t = h_ref[pl.ds(row, tm), :]
        out = (jnp.dot(agg.astype(jnp.bfloat16), wl2_ref[...],
                       preferred_element_type=jnp.float32)
               + jnp.dot(h_t, wr2_ref[...], preferred_element_type=jnp.float32)
               + b2_ref[...])
        o_ref[...] = _l2_normalize(out).astype(o_ref.dtype)


def sage_decoder(a_norm, x, params1, params2):
    """Fused two-layer SAGEConv decoder.

    a_norm : [N, N] row-normalized dense adjacency (precomputed per graph).
    x      : [N, C_in] node features.
    params : (w_l, b_l, w_r) per layer.
    """
    n, c_in = x.shape
    w_l1, b_l1, w_r1 = params1
    w_l2, b_l2, w_r2 = params2
    c_hid = w_l1.shape[1]
    c_out = w_l2.shape[1]

    n_p = _round_up(n, LANE)
    c_in_p = _round_up(c_in, LANE)
    c_hid_p = _round_up(c_hid, LANE)
    c_out_p = _round_up(c_out, LANE)

    tm = 256 if n_p % 256 == 0 else 128
    n_tiles = n_p // tm

    # bf16 MXU operands (zero padding -> padded rows/cols contribute nothing;
    # padded h rows (= normalize(b1)) are killed by A's zero padded columns).
    a_p = _pad_to(a_norm.astype(jnp.float32), (n_p, n_p)).astype(jnp.bfloat16)
    x_p = _pad_to(x.astype(jnp.float32), (n_p, c_in_p)).astype(jnp.bfloat16)
    wl1 = _pad_to(w_l1, (c_in_p, c_hid_p)).astype(jnp.bfloat16)
    wr1 = _pad_to(w_r1, (c_in_p, c_hid_p)).astype(jnp.bfloat16)
    wl2 = _pad_to(w_l2, (c_hid_p, c_out_p)).astype(jnp.bfloat16)
    wr2 = _pad_to(w_r2, (c_hid_p, c_out_p)).astype(jnp.bfloat16)
    b1 = _pad_to(b_l1.reshape(1, -1).astype(jnp.float32), (1, c_hid_p))
    b2 = _pad_to(b_l2.reshape(1, -1).astype(jnp.float32), (1, c_out_p))

    # VMEM budget: double-buffered A tile + resident X/weights/biases +
    # persistent h scratch + double-buffered out tile, plus headroom.
    needed = (2 * tm * n_p * 2
              + n_p * c_in_p * 2
              + 2 * (c_in_p * c_hid_p + c_hid_p * c_out_p) * 2
              + (c_hid_p + c_out_p) * 4
              + n_p * c_hid_p * 2
              + 2 * tm * c_out_p * 4)
    vmem_limit = int(min(max(2 * needed + (4 << 20), 32 << 20), 100 << 20))

    flops = (2 * n_p * n_p * (c_in_p + c_hid_p)
             + 4 * n_p * (c_in_p * c_hid_p + c_hid_p * c_out_p))
    bytes_accessed = (2 * a_p.size * 2 + x_p.size * 2
                      + (wl1.size + wr1.size + wl2.size + wr2.size) * 2
                      + (b1.size + b2.size) * 4 + 2 * n_p * c_out_p * 4)

    const = lambda shape: pl.BlockSpec(shape, lambda l, i: (0, 0))

    out_p = pl.pallas_call(
        functools.partial(_fused_sage_decoder_kernel, tm=tm),
        out_shape=jax.ShapeDtypeStruct((n_p, c_out_p), jnp.float32),
        grid=(2, n_tiles),
        in_specs=[
            pl.BlockSpec((tm, n_p), lambda l, i: (i, 0)),   # A_norm row tiles
            const((n_p, c_in_p)),                           # X (resident)
            const((c_in_p, c_hid_p)),                       # W_l1
            const((c_in_p, c_hid_p)),                       # W_r1
            const((1, c_hid_p)),                            # b1
            const((c_hid_p, c_out_p)),                      # W_l2
            const((c_hid_p, c_out_p)),                      # W_r2
            const((1, c_out_p)),                            # b2
        ],
        out_specs=pl.BlockSpec((tm, c_out_p), lambda l, i: (i, 0)),
        scratch_shapes=[pltpu.VMEM((n_p, c_hid_p), jnp.bfloat16)],
        compiler_params=pltpu.CompilerParams(
            dimension_semantics=("arbitrary", "arbitrary"),
            vmem_limit_bytes=vmem_limit),
        cost_estimate=pl.CostEstimate(
            flops=int(flops),
            transcendentals=int(2 * n_p),
            bytes_accessed=int(bytes_accessed)),
    )(a_p, x_p, wl1, wr1, b1, wl2, wr2, b2)

    return out_p[:n, :c_out]


def build_norm_adj(edge_index, num_nodes):
    """Dense row-normalized adjacency: A[i, j] = (#edges j->i) / deg_in(i).

    Built once per (static) graph with one-hot matmuls — no scatter-add in the
    hot path — and passed into the jitted forward.
    """
    src = edge_index[0]
    dst = edge_index[1]
    ids = jnp.arange(num_nodes, dtype=edge_index.dtype)
    onehot_src = (src[:, None] == ids[None, :]).astype(jnp.float32)  # [E, N]
    onehot_dst = (dst[:, None] == ids[None, :]).astype(jnp.float32)  # [E, N]
    adj = onehot_dst.T @ onehot_src                                  # [N, N]
    deg = jnp.sum(adj, axis=1, keepdims=True)
    return adj / jnp.maximum(deg, 1.0)  # no in-edges -> aggregate to 0


def init_sage_params(key, c_in, c_out):
    """Deterministic synthetic parameters for one SAGEConv layer."""
    k1, k2, k3 = jax.random.split(key, 3)
    scale = 1.0 / jnp.sqrt(jnp.float32(c_in))
    w_l = jax.random.uniform(k1, (c_in, c_out), jnp.float32, -scale, scale)
    b_l = jax.random.uniform(k2, (1, c_out), jnp.float32, -scale, scale)
    w_r = jax.random.uniform(k3, (c_in, c_out), jnp.float32, -scale, scale)
    return w_l, b_l, w_r


@jax.jit
def sage_decoder_forward(a_norm, x, params1, params2):
    return sage_decoder(a_norm, x, params1, params2)


if __name__ == "__main__":
    num_nodes = 32
    in_channels = 16
    out_channels = 8
    num_rand_edges = 64

    key = jax.random.PRNGKey(0)
    k_x, k_e, k_p1, k_p2 = jax.random.split(key, 4)

    # Node features [N, C_in]
    x = jax.random.normal(k_x, (num_nodes, in_channels), jnp.float32)

    # Edge index [2, E]: directed ring (both directions) + random edges
    idx = jnp.arange(num_nodes, dtype=jnp.int32)
    ring_src = jnp.concatenate([idx, (idx + 1) % num_nodes])
    ring_dst = jnp.concatenate([(idx + 1) % num_nodes, idx])
    rand_edges = jax.random.randint(
        k_e, (2, num_rand_edges), 0, num_nodes, dtype=jnp.int32)
    edge_index = jnp.stack([
        jnp.concatenate([ring_src, rand_edges[0]]),
        jnp.concatenate([ring_dst, rand_edges[1]]),
    ])

    # Deterministic synthetic parameters (no checkpoint load)
    params1 = init_sage_params(k_p1, in_channels, in_channels)
    params2 = init_sage_params(k_p2, in_channels, out_channels)

    # Adjacency built once per graph (outside the per-forward path).
    a_norm = build_norm_adj(edge_index, num_nodes)

    out = sage_decoder_forward(a_norm, x, params1, params2)
    out = jax.block_until_ready(out)

    assert out.shape == (num_nodes, out_channels)
    assert bool(jnp.all(jnp.isfinite(out)))
    print("KERNEL_OK")
</pallas_src>

<mosaic_0001>
module attributes {stable_mosaic.version = 11 : i64} {
  func.func @_fused_sage_decoder_kernel(%arg0: i32, %arg1: i32, %arg2: memref<128x128xbf16, #tpu.memory_space<vmem>>, %arg3: memref<128x128xbf16, #tpu.memory_space<vmem>>, %arg4: memref<128x128xbf16, #tpu.memory_space<vmem>>, %arg5: memref<128x128xbf16, #tpu.memory_space<vmem>>, %arg6: memref<1x128xf32, #tpu.memory_space<vmem>>, %arg7: memref<128x128xbf16, #tpu.memory_space<vmem>>, %arg8: memref<128x128xbf16, #tpu.memory_space<vmem>>, %arg9: memref<1x128xf32, #tpu.memory_space<vmem>>, %arg10: memref<128x128xf32, #tpu.memory_space<vmem>>, %arg11: memref<128x128xbf16, #tpu.memory_space<vmem>>) attributes {dimension_semantics = [#tpu.dimension_semantics<arbitrary>, #tpu.dimension_semantics<arbitrary>], iteration_bounds = array<i64: 2, 1>, scalar_prefetch = 0 : i64, scratch_operands = 1 : i64, tpu.core_type = #tpu.core_type<tc>, window_params = [{transform_indices = @transform_0, window_bounds = array<i64: 128, 128>}, {pipeline_mode = #tpu.pipeline_mode<synchronous>, transform_indices = @transform_1, window_bounds = array<i64: 128, 128>}, {pipeline_mode = #tpu.pipeline_mode<synchronous>, transform_indices = @transform_2, window_bounds = array<i64: 128, 128>}, {pipeline_mode = #tpu.pipeline_mode<synchronous>, transform_indices = @transform_3, window_bounds = array<i64: 128, 128>}, {pipeline_mode = #tpu.pipeline_mode<synchronous>, transform_indices = @transform_4, window_bounds = array<i64: 1, 128>}, {pipeline_mode = #tpu.pipeline_mode<synchronous>, transform_indices = @transform_5, window_bounds = array<i64: 128, 128>}, {pipeline_mode = #tpu.pipeline_mode<synchronous>, transform_indices = @transform_6, window_bounds = array<i64: 128, 128>}, {pipeline_mode = #tpu.pipeline_mode<synchronous>, transform_indices = @transform_7, window_bounds = array<i64: 1, 128>}, {transform_indices = @transform_8, window_bounds = array<i64: 128, 128>}]} {
    %c128_i32 = arith.constant 128 : i32
    %0 = arith.muli %arg1, %c128_i32 : i32
    %1 = tpu.assume_multiple %0, 128 : i32
    %c0 = arith.constant 0 : index
    %c0_0 = arith.constant 0 : index
    %2 = vector.load %arg2[%c0, %c0_0] : memref<128x128xbf16, #tpu.memory_space<vmem>>, vector<128x128xbf16>
    %c0_i32 = arith.constant 0 : i32
    %3 = arith.cmpi eq, %arg0, %c0_i32 : i32
    %4 = arith.extui %3 : i1 to i32
    %c0_i32_1 = arith.constant 0 : i32
    %5 = arith.cmpi ne, %4, %c0_i32_1 : i32
    scf.if %5 {
      %c0_3 = arith.constant 0 : index
      %c0_4 = arith.constant 0 : index
      %9 = vector.load %arg3[%c0_3, %c0_4] : memref<128x128xbf16, #tpu.memory_space<vmem>>, vector<128x128xbf16>
      %cst = arith.constant dense<0.000000e+00> : vector<128x128xf32>
      %10 = tpu.matmul %2, %9, %cst {dimension_numbers = #tpu.dot_dimension_numbers<[1], [0], [0], [1], [0, 0, 1, 1], [], []>} : vector<128x128xbf16>, vector<128x128xbf16>, vector<128x128xf32> -> vector<128x128xf32>
      %11 = arith.index_cast %1 : i32 to index
      %c0_5 = arith.constant 0 : index
      %12 = vector.load %arg3[%11, %c0_5] : memref<128x128xbf16, #tpu.memory_space<vmem>>, vector<128x128xbf16>
      %13 = arith.truncf %10 : vector<128x128xf32> to vector<128x128xbf16>
      %c0_6 = arith.constant 0 : index
      %c0_7 = arith.constant 0 : index
      %14 = vector.load %arg4[%c0_6, %c0_7] : memref<128x128xbf16, #tpu.memory_space<vmem>>, vector<128x128xbf16>
      %cst_8 = arith.constant dense<0.000000e+00> : vector<128x128xf32>
      %15 = tpu.matmul %13, %14, %cst_8 {dimension_numbers = #tpu.dot_dimension_numbers<[1], [0], [0], [1], [0, 0, 1, 1], [], []>} : vector<128x128xbf16>, vector<128x128xbf16>, vector<128x128xf32> -> vector<128x128xf32>
      %c0_9 = arith.constant 0 : index
      %c0_10 = arith.constant 0 : index
      %16 = vector.load %arg5[%c0_9, %c0_10] : memref<128x128xbf16, #tpu.memory_space<vmem>>, vector<128x128xbf16>
      %cst_11 = arith.constant dense<0.000000e+00> : vector<128x128xf32>
      %17 = tpu.matmul %12, %16, %cst_11 {dimension_numbers = #tpu.dot_dimension_numbers<[1], [0], [0], [1], [0, 0, 1, 1], [], []>} : vector<128x128xbf16>, vector<128x128xbf16>, vector<128x128xf32> -> vector<128x128xf32>
      %18 = arith.addf %15, %17 : vector<128x128xf32>
      %c0_12 = arith.constant 0 : index
      %c0_13 = arith.constant 0 : index
      %19 = vector.load %arg6[%c0_12, %c0_13] : memref<1x128xf32, #tpu.memory_space<vmem>>, vector<1x128xf32>
      %20 = vector.broadcast %19 : vector<1x128xf32> to vector<128x128xf32>
      %21 = arith.addf %18, %20 : vector<128x128xf32>
      %22 = arith.mulf %21, %21 : vector<128x128xf32>
      %cst_14 = arith.constant dense<0.000000e+00> : vector<128xf32>
      %23 = vector.multi_reduction <add>, %22, %cst_14 [1] : vector<128x128xf32> to vector<128xf32>
      %24 = vector.shape_cast %23 : vector<128xf32> to vector<128x1xf32>
      %cst_15 = arith.constant 1.000000e-24 : f32
      %25 = vector.broadcast %cst_15 : f32 to vector<128x1xf32>
      %26 = arith.maximumf %24, %25 : vector<128x1xf32>
      %27 = math.rsqrt %26 : vector<128x1xf32>
      %28 = vector.broadcast %27 : vector<128x1xf32> to vector<128x128xf32>
      %29 = arith.mulf %21, %28 : vector<128x128xf32>
      %30 = arith.truncf %29 : vector<128x128xf32> to vector<128x128xbf16>
      %31 = arith.index_cast %1 : i32 to index
      %c0_16 = arith.constant 0 : index
      %32 = vector.load %arg11[%31, %c0_16] : memref<128x128xbf16, #tpu.memory_space<vmem>>, vector<128x128xbf16>
      tpu.vector_store %arg11[%31, %c0_16], %30 {strides = array<i32>} : memref<128x128xbf16, #tpu.memory_space<vmem>>, vector<128x128xbf16>,
      %cst_17 = arith.constant 0.000000e+00 : f32
      %33 = vector.broadcast %cst_17 : f32 to vector<128x128xf32>
      %c0_18 = arith.constant 0 : index
      %c0_19 = arith.constant 0 : index
      %34 = vector.load %arg10[%c0_18, %c0_19] : memref<128x128xf32, #tpu.memory_space<vmem>>, vector<128x128xf32>
      tpu.vector_store %arg10[%c0_18, %c0_19], %33 {strides = array<i32>} : memref<128x128xf32, #tpu.memory_space<vmem>>, vector<128x128xf32>,
    } else {
    }
    %c1_i32 = arith.constant 1 : i32
    %6 = arith.cmpi eq, %arg0, %c1_i32 : i32
    %7 = arith.extui %6 : i1 to i32
    %c0_i32_2 = arith.constant 0 : i32
    %8 = arith.cmpi ne, %7, %c0_i32_2 : i32
    scf.if %8 {
      %c0_3 = arith.constant 0 : index
      %c0_4 = arith.constant 0 : index
      %9 = vector.load %arg11[%c0_3, %c0_4] : memref<128x128xbf16, #tpu.memory_space<vmem>>, vector<128x128xbf16>
      %cst = arith.constant dense<0.000000e+00> : vector<128x128xf32>
      %10 = tpu.matmul %2, %9, %cst {dimension_numbers = #tpu.dot_dimension_numbers<[1], [0], [0], [1], [0, 0, 1, 1], [], []>} : vector<128x128xbf16>, vector<128x128xbf16>, vector<128x128xf32> -> vector<128x128xf32>
      %11 = arith.index_cast %1 : i32 to index
      %c0_5 = arith.constant 0 : index
      %12 = vector.load %arg11[%11, %c0_5] : memref<128x128xbf16, #tpu.memory_space<vmem>>, vector<128x128xbf16>
      %13 = arith.truncf %10 : vector<128x128xf32> to vector<128x128xbf16>
      %c0_6 = arith.constant 0 : index
      %c0_7 = arith.constant 0 : index
      %14 = vector.load %arg7[%c0_6, %c0_7] : memref<128x128xbf16, #tpu.memory_space<vmem>>, vector<128x128xbf16>
      %cst_8 = arith.constant dense<0.000000e+00> : vector<128x128xf32>
      %15 = tpu.matmul %13, %14, %cst_8 {dimension_numbers = #tpu.dot_dimension_numbers<[1], [0], [0], [1], [0, 0, 1, 1], [], []>} : vector<128x128xbf16>, vector<128x128xbf16>, vector<128x128xf32> -> vector<128x128xf32>
      %c0_9 = arith.constant 0 : index
      %c0_10 = arith.constant 0 : index
      %16 = vector.load %arg8[%c0_9, %c0_10] : memref<128x128xbf16, #tpu.memory_space<vmem>>, vector<128x128xbf16>
      %cst_11 = arith.constant dense<0.000000e+00> : vector<128x128xf32>
      %17 = tpu.matmul %12, %16, %cst_11 {dimension_numbers = #tpu.dot_dimension_numbers<[1], [0], [0], [1], [0, 0, 1, 1], [], []>} : vector<128x128xbf16>, vector<128x128xbf16>, vector<128x128xf32> -> vector<128x128xf32>
      %18 = arith.addf %15, %17 : vector<128x128xf32>
      %c0_12 = arith.constant 0 : index
      %c0_13 = arith.constant 0 : index
      %19 = vector.load %arg9[%c0_12, %c0_13] : memref<1x128xf32, #tpu.memory_space<vmem>>, vector<1x128xf32>
      %20 = vector.broadcast %19 : vector<1x128xf32> to vector<128x128xf32>
      %21 = arith.addf %18, %20 : vector<128x128xf32>
      %22 = arith.mulf %21, %21 : vector<128x128xf32>
      %cst_14 = arith.constant dense<0.000000e+00> : vector<128xf32>
      %23 = vector.multi_reduction <add>, %22, %cst_14 [1] : vector<128x128xf32> to vector<128xf32>
      %24 = vector.shape_cast %23 : vector<128xf32> to vector<128x1xf32>
      %cst_15 = arith.constant 1.000000e-24 : f32
      %25 = vector.broadcast %cst_15 : f32 to vector<128x1xf32>
      %26 = arith.maximumf %24, %25 : vector<128x1xf32>
      %27 = math.rsqrt %26 : vector<128x1xf32>
      %28 = vector.broadcast %27 : vector<128x1xf32> to vector<128x128xf32>
      %29 = arith.mulf %21, %28 : vector<128x128xf32>
      %c0_16 = arith.constant 0 : index
      %c0_17 = arith.constant 0 : index
      %30 = vector.load %arg10[%c0_16, %c0_17] : memref<128x128xf32, #tpu.memory_space<vmem>>, vector<128x128xf32>
      tpu.vector_store %arg10[%c0_16, %c0_17], %29 {strides = array<i32>} : memref<128x128xf32, #tpu.memory_space<vmem>>, vector<128x128xf32>,
    } else {
    }
    return
  }
  func.func @transform_0(%arg0: i32, %arg1: i32) -> (i32, i32) {
    %c0_i32 = arith.constant 0 : i32
    %c0_i32_0 = arith.constant 0 : i32
    return %arg1, %c0_i32 : i32, i32
  }
  func.func @transform_1(%arg0: i32, %arg1: i32) -> (i32, i32) {
    %c0_i32 = arith.constant 0 : i32
    %c0_i32_0 = arith.constant 0 : i32
    %c0_i32_1 = arith.constant 0 : i32
    return %c0_i32, %c0_i32_0 : i32, i32
  }
  func.func @transform_2(%arg0: i32, %arg1: i32) -> (i32, i32) {
    %c0_i32 = arith.constant 0 : i32
    %c0_i32_0 = arith.constant 0 : i32
    %c0_i32_1 = arith.constant 0 : i32
    return %c0_i32, %c0_i32_0 : i32, i32
  }
  func.func @transform_3(%arg0: i32, %arg1: i32) -> (i32, i32) {
    %c0_i32 = arith.constant 0 : i32
    %c0_i32_0 = arith.constant 0 : i32
    %c0_i32_1 = arith.constant 0 : i32
    return %c0_i32, %c0_i32_0 : i32, i32
  }
  func.func @transform_4(%arg0: i32, %arg1: i32) -> (i32, i32) {
    %c0_i32 = arith.constant 0 : i32
    %c0_i32_0 = arith.constant 0 : i32
    %c0_i32_1 = arith.constant 0 : i32
    return %c0_i32, %c0_i32_0 : i32, i32
  }
  func.func @transform_5(%arg0: i32, %arg1: i32) -> (i32, i32) {
    %c0_i32 = arith.constant 0 : i32
    %c0_i32_0 = arith.constant 0 : i32
    %c0_i32_1 = arith.constant 0 : i32
    return %c0_i32, %c0_i32_0 : i32, i32
  }
  func.func @transform_6(%arg0: i32, %arg1: i32) -> (i32, i32) {
    %c0_i32 = arith.constant 0 : i32
    %c0_i32_0 = arith.constant 0 : i32
    %c0_i32_1 = arith.constant 0 : i32
    return %c0_i32, %c0_i32_0 : i32, i32
  }
  func.func @transform_7(%arg0: i32, %arg1: i32) -> (i32, i32) {
    %c0_i32 = arith.constant 0 : i32
    %c0_i32_0 = arith.constant 0 : i32
    %c0_i32_1 = arith.constant 0 : i32
    return %c0_i32, %c0_i32_0 : i32, i32
  }
  func.func @transform_8(%arg0: i32, %arg1: i32) -> (i32, i32) {
    %c0_i32 = arith.constant 0 : i32
    %c0_i32_0 = arith.constant 0 : i32
    return %arg1, %c0_i32 : i32, i32
  }
}

</mosaic_0001>

<llo_original>
// kernel: sage_decoder_forward.1
$region0: #{sage_decoder_forward.1}
  #allocation0 [shape = 'u32[]', space=smem, size = 0x4, offset = 0x4, fixed_abs, tag = 'smem constant byte address 0x4 - core index']
  #allocation1 [shape = 'u32[144,128]{1,0:T(1,128)}', space=vmem, size = 0x12000, scoped, tag = 'internal scratch']
  #allocation2 [shape = 'bf16[128,128]{1,0:T(16,128)(2,1)}', space=vmem, size = 0x8000, scoped, tag = 'scratch operand']
  %s0 = inlined_call_operand.vmem [shape: bf16[128,128], index: 0, kind: input, shape index: {}]
  %s1 = inlined_call_operand.vmem [shape: bf16[128,128], index: 1, kind: input, shape index: {}]
  %s2 = inlined_call_operand.vmem [shape: bf16[128,128], index: 2, kind: input, shape index: {}]
  %s3 = inlined_call_operand.vmem [shape: bf16[128,128], index: 3, kind: input, shape index: {}]
  %s4 = inlined_call_operand.vmem [shape: f32[1,128], index: 4, kind: input, shape index: {}]
  %s5 = inlined_call_operand.vmem [shape: bf16[128,128], index: 5, kind: input, shape index: {}]
  %s6 = inlined_call_operand.vmem [shape: bf16[128,128], index: 6, kind: input, shape index: {}]
  %s7 = inlined_call_operand.vmem [shape: f32[1,128], index: 7, kind: input, shape index: {}]
  %s8 = inlined_call_operand.vmem [shape: f32[128,128], index: 8, kind: output, shape index: {}]
  %s9 = sld [smem:[#allocation0]]
  $region73: #{sage_decoder_forward.1} parent=0
    _
  %s11 = ssub.s32 1, %s9
  %s12 = scalar_select 0, %s11, %s9
  loop: start=0, step=1, limit=4
  $region2: #{sage_decoder_forward.1} parent=0 // loop_pre_header
    _
  $region3: #{sage_decoder_forward.1} parent=0 // loop_header
    %s14 = sphi 0, %s18
    %p15 = scmp.ge.s32.totalorder %s14, 4
    %s21 = sphi 0, %s33
    %s22 = sphi 0, %s29
    %s23 = sphi 0, %s21
    %s24 = sphi 0, %s22
    %s25 = sphi 0, %s23
    %s26 = sphi 0, %s24
    %s36 = sphi 0, %s38
    %s39 = sphi 0, %s36
    %s40 = sphi 0, %s39
    %s56 = sphi 0, %s40
    %s60 = sphi 0, %s60
    %s62 = sphi 0, %s60
    %s63 = sphi 0, %s62
    %s77 = sphi 0, %s63
    %s81 = sphi 0, %s81
    %s83 = sphi 0, %s81
    %s84 = sphi 0, %s83
    %s98 = sphi 0, %s84
    %s102 = sphi 0, %s102
    %s104 = sphi 0, %s102
    %s105 = sphi 0, %s104
    %s119 = sphi 0, %s105
    %s123 = sphi 0, %s123
    %s125 = sphi 0, %s123
    %s126 = sphi 0, %s125
    %s140 = sphi 0, %s126
    %s144 = sphi 0, %s144
    %s146 = sphi 0, %s144
    %s147 = sphi 0, %s146
    %s161 = sphi 0, %s147
    %s165 = sphi 0, %s165
    %s167 = sphi 0, %s165
    %s168 = sphi 0, %s167
    %s182 = sphi 0, %s168
    %s186 = sphi 0, %s186
    %s188 = sphi 0, %s186
    %s189 = sphi 0, %s188
    %s203 = sphi 0, %s189
    %s209 = sphi 0, %s211
    %s212 = sphi 0, %s209
    %s213 = sphi 0, %s212
    %s229 = sphi 0, %s213
  $region4: #{sage_decoder_forward.1} parent=0 // loop_header_branch
    %17 = sbr.rel (%p15) target = $region8
  $region5: #{sage_decoder_forward.1} parent=0 // loop_body
    %s19 = ssub.s32 %s14, 1
    %s20 = ssub.s32 %s14, 2
    %s27 = sadd.s32 1, %s22
    %p28 = scmp.ge.s32.totalorder %s27, 1
    %s29 = scalar_select %p28, 0, %s27
    %s30 = sadd.s32 1, %s21
    %s31 = scalar_select %p28, %s30, %s21
    %p32 = scmp.ge.s32.totalorder %s31, 2
    %s33 = scalar_select %p32, 0, %s31
    %s34 = ssub.s32 %s22, %s29
    %p35 = scmp.eq.s32.totalorder %s34, 0
    %s37 = sadd.s32 %s36, 1
    %s38 = scalar_select %p35, %s36, %s37
    %p41 = pneg %p35
    %p42 = scmp.eq.s32.totalorder %s14, 1
    %p43 = por %p41, %p42
    %p44 = scmp.ne.s32.totalorder %s36, %s39
    %p45 = scmp.eq.s32.totalorder %s14, 0
    %p46 = por %p44, %p45
    %p47 = scmp.ne.s32.totalorder %s36, %s39
    %p48 = scmp.eq.s32.totalorder %s19, 1
    %p49 = por %p47, %p48
    %p50 = scmp.ne.s32.totalorder %s39, %s40
    %p51 = scmp.eq.s32.totalorder %s19, 0
    %p52 = por %p50, %p51
    %p53 = scmp.ne.s32.totalorder %s39, %s40
    %p54 = scmp.eq.s32.totalorder %s20, 1
    %p55 = por %p53, %p54
    %p57 = scmp.ne.s32.totalorder %s40, %s56
    %p58 = scmp.eq.s32.totalorder %s20, 0
    %p59 = por %p57, %p58
    %s61 = sadd.s32 %s60, 1
    %p64 = scmp.eq.s32.totalorder %s14, 1
    %p65 = scmp.ne.s32.totalorder %s60, %s62
    %p66 = scmp.eq.s32.totalorder %s14, 0
    %p67 = por %p65, %p66
    %p68 = scmp.ne.s32.totalorder %s60, %s62
    %p69 = scmp.eq.s32.totalorder %s19, 1
    %p70 = por %p68, %p69
    %p71 = scmp.ne.s32.totalorder %s62, %s63
    %p72 = scmp.eq.s32.totalorder %s19, 0
    %p73 = por %p71, %p72
    %p74 = scmp.ne.s32.totalorder %s62, %s63
    %p75 = scmp.eq.s32.totalorder %s20, 1
    %p76 = por %p74, %p75
    %p78 = scmp.ne.s32.totalorder %s63, %s77
    %p79 = scmp.eq.s32.totalorder %s20, 0
    %p80 = por %p78, %p79
    %s82 = sadd.s32 %s81, 1
    %p85 = scmp.eq.s32.totalorder %s14, 1
    %p86 = scmp.ne.s32.totalorder %s81, %s83
    %p87 = scmp.eq.s32.totalorder %s14, 0
    %p88 = por %p86, %p87
    %p89 = scmp.ne.s32.totalorder %s81, %s83
    %p90 = scmp.eq.s32.totalorder %s19, 1
    %p91 = por %p89, %p90
    %p92 = scmp.ne.s32.totalorder %s83, %s84
    %p93 = scmp.eq.s32.totalorder %s19, 0
    %p94 = por %p92, %p93
    %p95 = scmp.ne.s32.totalorder %s83, %s84
    %p96 = scmp.eq.s32.totalorder %s20, 1
    %p97 = por %p95, %p96
    %p99 = scmp.ne.s32.totalorder %s84, %s98
    %p100 = scmp.eq.s32.totalorder %s20, 0
    %p101 = por %p99, %p100
    %s103 = sadd.s32 %s102, 1
    %p106 = scmp.eq.s32.totalorder %s14, 1
    %p107 = scmp.ne.s32.totalorder %s102, %s104
    %p108 = scmp.eq.s32.totalorder %s14, 0
    %p109 = por %p107, %p108
    %p110 = scmp.ne.s32.totalorder %s102, %s104
    %p111 = scmp.eq.s32.totalorder %s19, 1
    %p112 = por %p110, %p111
    %p113 = scmp.ne.s32.totalorder %s104, %s105
    %p114 = scmp.eq.s32.totalorder %s19, 0
    %p115 = por %p113, %p114
    %p116 = scmp.ne.s32.totalorder %s104, %s105
    %p117 = scmp.eq.s32.totalorder %s20, 1
    %p118 = por %p116, %p117
    %p120 = scmp.ne.s32.totalorder %s105, %s119
    %p121 = scmp.eq.s32.totalorder %s20, 0
    %p122 = por %p120, %p121
    %s124 = sadd.s32 %s123, 1
    %p127 = scmp.eq.s32.totalorder %s14, 1
    %p128 = scmp.ne.s32.totalorder %s123, %s125
    %p129 = scmp.eq.s32.totalorder %s14, 0
    %p130 = por %p128, %p129
    %p131 = scmp.ne.s32.totalorder %s123, %s125
    %p132 = scmp.eq.s32.totalorder %s19, 1
    %p133 = por %p131, %p132
    %p134 = scmp.ne.s32.totalorder %s125, %s126
    %p135 = scmp.eq.s32.totalorder %s19, 0
    %p136 = por %p134, %p135
    %p137 = scmp.ne.s32.totalorder %s125, %s126
    %p138 = scmp.eq.s32.totalorder %s20, 1
    %p139 = por %p137, %p138
    %p141 = scmp.ne.s32.totalorder %s126, %s140
    %p142 = scmp.eq.s32.totalorder %s20, 0
    %p143 = por %p141, %p142
    %s145 = sadd.s32 %s144, 1
    %p148 = scmp.eq.s32.totalorder %s14, 1
    %p149 = scmp.ne.s32.totalorder %s144, %s146
    %p150 = scmp.eq.s32.totalorder %s14, 0
    %p151 = por %p149, %p150
    %p152 = scmp.ne.s32.totalorder %s144, %s146
    %p153 = scmp.eq.s32.totalorder %s19, 1
    %p154 = por %p152, %p153
    %p155 = scmp.ne.s32.totalorder %s146, %s147
    %p156 = scmp.eq.s32.totalorder %s19, 0
    %p157 = por %p155, %p156
    %p158 = scmp.ne.s32.totalorder %s146, %s147
    %p159 = scmp.eq.s32.totalorder %s20, 1
    %p160 = por %p158, %p159
    %p162 = scmp.ne.s32.totalorder %s147, %s161
    %p163 = scmp.eq.s32.totalorder %s20, 0
    %p164 = por %p162, %p163
    %s166 = sadd.s32 %s165, 1
    %p169 = scmp.eq.s32.totalorder %s14, 1
    %p170 = scmp.ne.s32.totalorder %s165, %s167
    %p171 = scmp.eq.s32.totalorder %s14, 0
    %p172 = por %p170, %p171
    %p173 = scmp.ne.s32.totalorder %s165, %s167
    %p174 = scmp.eq.s32.totalorder %s19, 1
    %p175 = por %p173, %p174
    %p176 = scmp.ne.s32.totalorder %s167, %s168
    %p177 = scmp.eq.s32.totalorder %s19, 0
    %p178 = por %p176, %p177
    %p179 = scmp.ne.s32.totalorder %s167, %s168
    %p180 = scmp.eq.s32.totalorder %s20, 1
    %p181 = por %p179, %p180
    %p183 = scmp.ne.s32.totalorder %s168, %s182
    %p184 = scmp.eq.s32.totalorder %s20, 0
    %p185 = por %p183, %p184
    %s187 = sadd.s32 %s186, 1
    %p190 = scmp.eq.s32.totalorder %s14, 1
    %p191 = scmp.ne.s32.totalorder %s186, %s188
    %p192 = scmp.eq.s32.totalorder %s14, 0
    %p193 = por %p191, %p192
    %p194 = scmp.ne.s32.totalorder %s186, %s188
    %p195 = scmp.eq.s32.totalorder %s19, 1
    %p196 = por %p194, %p195
    %p197 = scmp.ne.s32.totalorder %s188, %s189
    %p198 = scmp.eq.s32.totalorder %s19, 0
    %p199 = por %p197, %p198
    %p200 = scmp.ne.s32.totalorder %s188, %s189
    %p201 = scmp.eq.s32.totalorder %s20, 1
    %p202 = por %p200, %p201
    %p204 = scmp.ne.s32.totalorder %s189, %s203
    %p205 = scmp.eq.s32.totalorder %s20, 0
    %p206 = por %p204, %p205
    %s207 = ssub.s32 %s22, %s29
    %p208 = scmp.eq.s32.totalorder %s207, 0
    %s210 = sadd.s32 %s209, 1
    %s211 = scalar_select %p208, %s209, %s210
    %p214 = pneg %p208
    %p215 = scmp.eq.s32.totalorder %s14, 1
    %p216 = por %p214, %p215
    %p217 = scmp.ne.s32.totalorder %s209, %s212
    %p218 = scmp.eq.s32.totalorder %s14, 0
    %p219 = por %p217, %p218
    %p220 = scmp.ne.s32.totalorder %s209, %s212
    %p221 = scmp.eq.s32.totalorder %s19, 1
    %p222 = por %p220, %p221
    %p223 = scmp.ne.s32.totalorder %s212, %s213
    %p224 = scmp.eq.s32.totalorder %s19, 0
    %p225 = por %p223, %p224
    %p226 = scmp.ne.s32.totalorder %s212, %s213
    %p227 = scmp.eq.s32.totalorder %s20, 1
    %p228 = por %p226, %p227
    %p230 = scmp.ne.s32.totalorder %s213, %s229
    %p231 = scmp.eq.s32.totalorder %s20, 0
    %p232 = por %p230, %p231
    %p233 = scmp.le.s32.totalorder 1, %s14
    %p234 = scmp.lt.s32.totalorder %s14, 3
    %p235 = pnand %p233, %p234
    %p236 = pneg %p235
    // Predicated region
    $region9: #{sage_decoder_forward.1} parent=5 // pred_check
      _
    $region10: #{sage_decoder_forward.1} parent=5 // pred_check_branch
      %238 = sbr.rel (%p235) target = $region12
    $region11: #{sage_decoder_forward.1} parent=5 // pred_region
      %s239 = ssub.s32 %s14, 1
      // Predicated region
      $region13: #{sage_decoder_forward.1} parent=11 // pred_check
        %p240 = pneg %p52
      $region14: #{sage_decoder_forward.1} parent=11 // pred_check_branch
        %242 = sbr.rel (%p240) target = $region16
      $region15: #{sage_decoder_forward.1} parent=11 // pred_region
        %s243 = smul.u32 16, %s24
        %p244 = scmp.lt.s32.totalorder %s243, 15
        %s245 = scalar_select %p244, %s243, 15
        %s246 = smul.addr %s245, 4
        %s247 = scalar_lea.vmem %s0, %s246
        %s248 = smul.u32 16, %s24
      $region16: #{sage_decoder_forward.1} parent=11 // pred_fallthru
        _
      // Predicated region
      $region17: #{sage_decoder_forward.1} parent=11 // pred_check
        %p249 = pneg %p73
      $region18: #{sage_decoder_forward.1} parent=11 // pred_check_branch
        %251 = sbr.rel (%p249) target = $region20
      $region19: #{sage_decoder_forward.1} parent=11 // pred_region
        _
      $region20: #{sage_decoder_forward.1} parent=11 // pred_fallthru
        _
      // Predicated region
      $region21: #{sage_decoder_forward.1} parent=11 // pred_check
        %p252 = pneg %p94
      $region22: #{sage_decoder_forward.1} parent=11 // pred_check_branch
        %254 = sbr.rel (%p252) target = $region24
      $region23: #{sage_decoder_forward.1} parent=11 // pred_region
        _
      $region24: #{sage_decoder_forward.1} parent=11 // pred_fallthru
        _
      // Predicated region
      $region25: #{sage_decoder_forward.1} parent=11 // pred_check
        %p255 = pneg %p115
      $region26: #{sage_decoder_forward.1} parent=11 // pred_check_branch
        %257 = sbr.rel (%p255) target = $region28
      $region27: #{sage_decoder_forward.1} parent=11 // pred_region
        _
      $region28: #{sage_decoder_forward.1} parent=11 // pred_fallthru
        _
      // Predicated region
      $region29: #{sage_decoder_forward.1} parent=11 // pred_check
        %p258 = pneg %p136
      $region30: #{sage_decoder_forward.1} parent=11 // pred_check_branch
        %260 = sbr.rel (%p258) target = $region32
      $region31: #{sage_decoder_forward.1} parent=11 // pred_region
        _
      $region32: #{sage_decoder_forward.1} parent=11 // pred_fallthru
        _
      // Predicated region
      $region33: #{sage_decoder_forward.1} parent=11 // pred_check
        %p261 = pneg %p157
      $region34: #{sage_decoder_forward.1} parent=11 // pred_check_branch
        %263 = sbr.rel (%p261) target = $region36
      $region35: #{sage_decoder_forward.1} parent=11 // pred_region
        _
      $region36: #{sage_decoder_forward.1} parent=11 // pred_fallthru
        _
      // Predicated region
      $region37: #{sage_decoder_forward.1} parent=11 // pred_check
        %p264 = pneg %p178
      $region38: #{sage_decoder_forward.1} parent=11 // pred_check_branch
        %266 = sbr.rel (%p264) target = $region40
      $region39: #{sage_decoder_forward.1} parent=11 // pred_region
        _
      $region40: #{sage_decoder_forward.1} parent=11 // pred_fallthru
        _
      // Predicated region
      $region41: #{sage_decoder_forward.1} parent=11 // pred_check
        %p267 = pneg %p199
      $region42: #{sage_decoder_forward.1} parent=11 // pred_check_branch
        %269 = sbr.rel (%p267) target = $region44
      $region43: #{sage_decoder_forward.1} parent=11 // pred_region
        _
      $region44: #{sage_decoder_forward.1} parent=11 // pred_fallthru
        _
    $region12: #{sage_decoder_forward.1} parent=5 // pred_fallthru
      _
    %p270 = scmp.lt.s32.totalorder %s14, 2
    // Predicated region
    $region45: #{sage_decoder_forward.1} parent=5 // pred_check
      %p271 = pneg %p270
    $region46: #{sage_decoder_forward.1} parent=5 // pred_check_branch
      %273 = sbr.rel (%p271) target = $region48
    $region47: #{sage_decoder_forward.1} parent=5 // pred_region
      _
    $region48: #{sage_decoder_forward.1} parent=5 // pred_fallthru
      _
    %p274 = scmp.le.s32.totalorder 1, %s14
    %p275 = scmp.lt.s32.totalorder %s14, 3
    %p276 = pnand %p274, %p275
    %p277 = pneg %p276
    // Predicated region
    $region49: #{sage_decoder_forward.1} parent=5 // pred_check
      _
    $region50: #{sage_decoder_forward.1} parent=5 // pred_check_branch
      %279 = sbr.rel (%p276) target = $region52
    $region51: #{sage_decoder_forward.1} parent=5 // pred_region
      %s280 = ssub.s32 %s14, 1
      %s281 = smul.u32 16, %s24
      %p282 = scmp.lt.s32.totalorder %s281, 15
      %s283 = scalar_select %p282, %s281, 15
      %s284 = smul.addr %s283, 4
      %s285 = scalar_lea.vmem %s0, %s284
      %p286 = pneg %p52
      %p287 = pneg %p49
      %p288 = pneg %p73
      %p289 = pneg %p70
      %p290 = pneg %p94
      %p291 = pneg %p91
      %p292 = pneg %p115
      %p293 = pneg %p112
      %p294 = pneg %p136
      %p295 = pneg %p133
      %p296 = pneg %p157
      %p297 = pneg %p154
      %p298 = pneg %p178
      %p299 = pneg %p175
      %p300 = pneg %p199
      %p301 = pneg %p196
      %p302 = pneg %p225
      %p303 = pneg %p222
      %s304 = smul.u32 16, %s24
      %p305 = scmp.lt.s32.totalorder %s304, 15
      %s306 = scalar_select %p305, %s304, 15
      %s307 = smul.addr %s306, 8
      %s308 = scalar_lea.vmem %s8, %s307
      %s309 = smul.u32 16, %s24
      %p310 = scmp.lt.s32.totalorder %s309, 15
      %s311 = scalar_select %p310, %s309, 15
      %s312 = smul.addr %s311, 4
      %s313 = scalar_lea.vmem %s0, %s312
      %s314 = smul.u32 16, %s24
      %s315 = smul.u32 16, %s24
      %p316 = scmp.lt.s32.totalorder %s315, 15
      %s317 = scalar_select %p316, %s315, 15
      %s318 = smul.addr %s317, 8
      %s319 = scalar_lea.vmem %s8, %s318
      %s320 = smul.u32 16, %s24
      %s322 = smul.u32 %s24, 128
      %v323 = vld [vmem:[%s313] sm:$0xf]
      %v324 = vld [vmem:[%s313 + $0x4] sm:$0xf]
      %v325 = vld [vmem:[%s313 + $0x8] sm:$0xf]
      %v326 = vld [vmem:[%s313 + $0xc] sm:$0xf]
      %v327 = vld [vmem:[%s313 + $0x10] sm:$0xf]
      %v328 = vld [vmem:[%s313 + $0x14] sm:$0xf]
      %v329 = vld [vmem:[%s313 + $0x18] sm:$0xf]
      %v330 = vld [vmem:[%s313 + $0x1c] sm:$0xf]
      %v331 = vld [vmem:[%s313 + $0x20] sm:$0xf]
      %v332 = vld [vmem:[%s313 + $0x24] sm:$0xf]
      %v333 = vld [vmem:[%s313 + $0x28] sm:$0xf]
      %v334 = vld [vmem:[%s313 + $0x2c] sm:$0xf]
      %v335 = vld [vmem:[%s313 + $0x30] sm:$0xf]
      %v336 = vld [vmem:[%s313 + $0x34] sm:$0xf]
      %v337 = vld [vmem:[%s313 + $0x38] sm:$0xf]
      %v338 = vld [vmem:[%s313 + $0x3c] sm:$0xf]
      %p339 = scmp.eq.s32.totalorder %s23, 0
      // Predicated region
      $region53: #{sage_decoder_forward.1} parent=51 // pred_check
        %p340 = pneg %p339
      $region54: #{sage_decoder_forward.1} parent=51 // pred_check_branch
        %342 = sbr.rel (%p340) target = $region56
      $region55: #{sage_decoder_forward.1} parent=51 // pred_region
        %v343 = vld [vmem:[%s1] sm:$0xf]
        %v344 = vld [vmem:[%s1 + $0x4] sm:$0xf]
        %v345 = vld [vmem:[%s1 + $0x8] sm:$0xf]
        %v346 = vld [vmem:[%s1 + $0xc] sm:$0xf]
        %v347 = vld [vmem:[%s1 + $0x10] sm:$0xf]
        %v348 = vld [vmem:[%s1 + $0x14] sm:$0xf]
        %v349 = vld [vmem:[%s1 + $0x18] sm:$0xf]
        %v350 = vld [vmem:[%s1 + $0x1c] sm:$0xf]
        %v351 = vld [vmem:[%s1 + $0x20] sm:$0xf]
        %v352 = vld [vmem:[%s1 + $0x24] sm:$0xf]
        %v353 = vld [vmem:[%s1 + $0x28] sm:$0xf]
        %v354 = vld [vmem:[%s1 + $0x2c] sm:$0xf]
        %v355 = vld [vmem:[%s1 + $0x30] sm:$0xf]
        %v356 = vld [vmem:[%s1 + $0x34] sm:$0xf]
        %v357 = vld [vmem:[%s1 + $0x38] sm:$0xf]
        %v358 = vld [vmem:[%s1 + $0x3c] sm:$0xf]
        %v375 = vunpack.c.l.b16 %v323
        %v376 = vunpack.c.l.b16 %v324
        %v377 = vunpack.c.l.b16 %v325
        %v378 = vunpack.c.l.b16 %v326
        %v379 = vunpack.c.l.b16 %v327
        %v380 = vunpack.c.l.b16 %v328
        %v381 = vunpack.c.l.b16 %v329
        %v382 = vunpack.c.l.b16 %v330
        %v383 = vunpack.c.l.b16 %v331
        %v384 = vunpack.c.l.b16 %v332
        %v385 = vunpack.c.l.b16 %v333
        %v386 = vunpack.c.l.b16 %v334
        %v387 = vunpack.c.l.b16 %v335
        %v388 = vunpack.c.l.b16 %v336
        %v389 = vunpack.c.l.b16 %v337
        %v390 = vunpack.c.l.b16 %v338
        %v391 = vpack.c.b16 %v376, %v375
        %v392 = vpack.c.b16 %v378, %v377
        %v393 = vpack.c.b16 %v380, %v379
        %v394 = vpack.c.b16 %v382, %v381
        %v395 = vpack.c.b16 %v384, %v383
        %v396 = vpack.c.b16 %v386, %v385
        %v397 = vpack.c.b16 %v388, %v387
        %v398 = vpack.c.b16 %v390, %v389
        %v423 = vunpack.c.l.b16 %v343
        %v424 = vunpack.c.l.b16 %v344
        %v425 = vunpack.c.l.b16 %v345
        %v426 = vunpack.c.l.b16 %v346
        %v427 = vunpack.c.l.b16 %v347
        %v428 = vunpack.c.l.b16 %v348
        %v429 = vunpack.c.l.b16 %v349
        %v430 = vunpack.c.l.b16 %v350
        %v431 = vunpack.c.l.b16 %v351
        %v432 = vunpack.c.l.b16 %v352
        %v433 = vunpack.c.l.b16 %v353
        %v434 = vunpack.c.l.b16 %v354
        %v435 = vunpack.c.l.b16 %v355
        %v436 = vunpack.c.l.b16 %v356
        %v437 = vunpack.c.l.b16 %v357
        %v438 = vunpack.c.l.b16 %v358
        %v439 = vpack.c.b16 %v424, %v423
        %v440 = vpack.c.b16 %v426, %v425
        %v441 = vpack.c.b16 %v428, %v427
        %v442 = vpack.c.b16 %v430, %v429
        %v443 = vpack.c.b16 %v432, %v431
        %v444 = vpack.c.b16 %v434, %v433
        %v445 = vpack.c.b16 %v436, %v435
        %v446 = vpack.c.b16 %v438, %v437
        %455 = vmatprep.subr.bf16.mxu0 0
        %456 = vmatpush1.bf16.msra.mxu0 %v439
        %457 = vmatprep.subr.bf16.mxu0 0
        %458 = vmatpush1.bf16.msra.mxu0 %v440
        %459 = vmatprep.subr.bf16.mxu0 0
        %460 = vmatpush1.bf16.msra.mxu0 %v441
        %461 = vmatprep.subr.bf16.mxu0 0
        %462 = vmatpush1.bf16.msra.mxu0 %v442
        %463 = vmatprep.subr.bf16.mxu0 0
        %464 = vmatpush1.bf16.msra.mxu0 %v443
        %465 = vmatprep.subr.bf16.mxu0 0
        %466 = vmatpush1.bf16.msra.mxu0 %v444
        %467 = vmatprep.subr.bf16.mxu0 0
        %468 = vmatpush1.bf16.msra.mxu0 %v445
        %469 = vmatprep.subr.bf16.mxu0 0
        %470 = vmatpush1.bf16.msra.mxu0 %v446
        %471 = vmatprep.subr.bf16.mxu0 0
        %472 = vmatpush1.bf16.msra.mxu0 0
        %473 = vmatprep.subr.bf16.mxu0 0
        %474 = vmatpush1.bf16.msra.mxu0 0
        %475 = vmatprep.subr.bf16.mxu0 0
        %476 = vmatpush1.bf16.msra.mxu0 0
        %477 = vmatprep.subr.bf16.mxu0 0
        %478 = vmatpush1.bf16.msra.mxu0 0
        %479 = vmatprep.subr.bf16.mxu0 0
        %480 = vmatpush1.bf16.msra.mxu0 0
        %481 = vmatprep.subr.bf16.mxu0 0
        %482 = vmatpush1.bf16.msra.mxu0 0
        %483 = vmatprep.subr.bf16.mxu0 0
        %484 = vmatpush1.bf16.msra.mxu0 0
        %485 = vmatprep.subr.bf16.mxu0 0
        %486 = vmatpush1.bf16.msra.mxu0 0
        %487 = vmatprep.mubr.bf16.mxu0 0
        %488 = vmatmul.mubr.bf16.gmra.mrb[0].mxu0 %v391
        %v489 = vpop.f32.mrb[0].mxu0
        %v490 = vadd.f32 0.0, %v489
        %v491 = vpop.f32.mrb[0].mxu0
        %v492 = vpop.f32.mrb[0].mxu0
        %v493 = vadd.f32 0.0, %v492
        %v494 = vpop.f32.mrb[0].mxu0
        %495 = vmatprep.mubr.bf16.mxu0 0
        %496 = vmatmul.mubr.bf16.gmra.mrb[0].mxu0 %v392
        %v497 = vpop.f32.mrb[0].mxu0
        %v498 = vadd.f32 0.0, %v497
        %v499 = vpop.f32.mrb[0].mxu0
        %v500 = vpop.f32.mrb[0].mxu0
        %v501 = vadd.f32 0.0, %v500
        %v502 = vpop.f32.mrb[0].mxu0
        %503 = vmatprep.mubr.bf16.mxu0 0
        %504 = vmatmul.mubr.bf16.gmra.mrb[0].mxu0 %v393
        %v505 = vpop.f32.mrb[0].mxu0
        %v506 = vadd.f32 0.0, %v505
        %v507 = vpop.f32.mrb[0].mxu0
        %v508 = vpop.f32.mrb[0].mxu0
        %v509 = vadd.f32 0.0, %v508
        %v510 = vpop.f32.mrb[0].mxu0
        %511 = vmatprep.mubr.bf16.mxu0 0
        %512 = vmatmul.mubr.bf16.gmra.mrb[0].mxu0 %v394
        %v513 = vpop.f32.mrb[0].mxu0
        %v514 = vadd.f32 0.0, %v513
        %v515 = vpop.f32.mrb[0].mxu0
        %v516 = vpop.f32.mrb[0].mxu0
        %v517 = vadd.f32 0.0, %v516
        %v518 = vpop.f32.mrb[0].mxu0
        %519 = vmatprep.mubr.bf16.mxu0 0
        %520 = vmatmul.mubr.bf16.gmra.mrb[0].mxu0 %v395
        %v521 = vpop.f32.mrb[0].mxu0
        %v522 = vadd.f32 0.0, %v521
        %v523 = vpop.f32.mrb[0].mxu0
        %v524 = vpop.f32.mrb[0].mxu0
        %v525 = vadd.f32 0.0, %v524
        %v526 = vpop.f32.mrb[0].mxu0
        %527 = vmatprep.mubr.bf16.mxu0 0
        %528 = vmatmul.mubr.bf16.gmra.mrb[0].mxu0 %v396
        %v529 = vpop.f32.mrb[0].mxu0
        %v530 = vadd.f32 0.0, %v529
        %v531 = vpop.f32.mrb[0].mxu0
        %v532 = vpop.f32.mrb[0].mxu0
        %v533 = vadd.f32 0.0, %v532
        %v534 = vpop.f32.mrb[0].mxu0
        %535 = vmatprep.mubr.bf16.mxu0 0
        %536 = vmatmul.mubr.bf16.gmra.mrb[0].mxu0 %v397
        %v537 = vpop.f32.mrb[0].mxu0
        %v538 = vadd.f32 0.0, %v537
        %v539 = vpop.f32.mrb[0].mxu0
        %v540 = vpop.f32.mrb[0].mxu0
        %v541 = vadd.f32 0.0, %v540
        %v542 = vpop.f32.mrb[0].mxu0
        %543 = vmatprep.mubr.bf16.mxu0 0
        %544 = vmatmul.mubr.bf16.gmra.mrb[0].mxu0 %v398
        %v545 = vpop.f32.mrb[0].mxu0
        %v546 = vadd.f32 0.0, %v545
        %v547 = vpop.f32.mrb[0].mxu0
        %v548 = vpop.f32.mrb[0].mxu0
        %v549 = vadd.f32 0.0, %v548
        %v550 = vpop.f32.mrb[0].mxu0
        %551 = vdwg.mxu0
        %s552 = sshra.s32 %s322, 3
        %s553 = sand.u32 %s322, 7
        %s554 = smul.addr %s552, 4
        %s555 = scalar_lea.vmem %s1, %s554
        %v556 = vld [vmem:[%s555] sm:$0xf]
        %v557 = vld [vmem:[%s555 + $0x4] sm:$0xf]
        %v558 = vld [vmem:[%s555 + $0x8] sm:$0xf]
        %v559 = vld [vmem:[%s555 + $0xc] sm:$0xf]
        %v560 = vld [vmem:[%s555 + $0x10] sm:$0xf]
        %v561 = vld [vmem:[%s555 + $0x14] sm:$0xf]
        %v562 = vld [vmem:[%s555 + $0x18] sm:$0xf]
        %v563 = vld [vmem:[%s555 + $0x1c] sm:$0xf]
        %v564 = vld [vmem:[%s555 + $0x20] sm:$0xf]
        %v565 = vld [vmem:[%s555 + $0x24] sm:$0xf]
        %v566 = vld [vmem:[%s555 + $0x28] sm:$0xf]
        %v567 = vld [vmem:[%s555 + $0x2c] sm:$0xf]
        %v568 = vld [vmem:[%s555 + $0x30] sm:$0xf]
        %v569 = vld [vmem:[%s555 + $0x34] sm:$0xf]
        %v570 = vld [vmem:[%s555 + $0x38] sm:$0xf]
        %v571 = vld [vmem:[%s555 + $0x3c] sm:$0xf]
        %v572 = vpack.c.bf16 %v493, %v490
        %v573 = vpack.c.bf16 %v501, %v498
        %v574 = vpack.c.bf16 %v509, %v506
        %v575 = vpack.c.bf16 %v517, %v514
        %v576 = vpack.c.bf16 %v525, %v522
        %v577 = vpack.c.bf16 %v533, %v530
        %v578 = vpack.c.bf16 %v541, %v538
        %v579 = vpack.c.bf16 %v549, %v546
        %v580 = vld [vmem:[%s2] sm:$0xf]
        %v581 = vld [vmem:[%s2 + $0x4] sm:$0xf]
        %v582 = vld [vmem:[%s2 + $0x8] sm:$0xf]
        %v583 = vld [vmem:[%s2 + $0xc] sm:$0xf]
        %v584 = vld [vmem:[%s2 + $0x10] sm:$0xf]
        %v585 = vld [vmem:[%s2 + $0x14] sm:$0xf]
        %v586 = vld [vmem:[%s2 + $0x18] sm:$0xf]
        %v587 = vld [vmem:[%s2 + $0x1c] sm:$0xf]
        %v588 = vld [vmem:[%s2 + $0x20] sm:$0xf]
        %v589 = vld [vmem:[%s2 + $0x24] sm:$0xf]
        %v590 = vld [vmem:[%s2 + $0x28] sm:$0xf]
        %v591 = vld [vmem:[%s2 + $0x2c] sm:$0xf]
        %v592 = vld [vmem:[%s2 + $0x30] sm:$0xf]
        %v593 = vld [vmem:[%s2 + $0x34] sm:$0xf]
        %v594 = vld [vmem:[%s2 + $0x38] sm:$0xf]
        %v595 = vld [vmem:[%s2 + $0x3c] sm:$0xf]
        %v596 = vld [vmem:[%s3] sm:$0xf]
        %v597 = vld [vmem:[%s3 + $0x4] sm:$0xf]
        %v598 = vld [vmem:[%s3 + $0x8] sm:$0xf]
        %v599 = vld [vmem:[%s3 + $0xc] sm:$0xf]
        %v600 = vld [vmem:[%s3 + $0x10] sm:$0xf]
        %v601 = vld [vmem:[%s3 + $0x14] sm:$0xf]
        %v602 = vld [vmem:[%s3 + $0x18] sm:$0xf]
        %v603 = vld [vmem:[%s3 + $0x1c] sm:$0xf]
        %v604 = vld [vmem:[%s3 + $0x20] sm:$0xf]
        %v605 = vld [vmem:[%s3 + $0x24] sm:$0xf]
        %v606 = vld [vmem:[%s3 + $0x28] sm:$0xf]
        %v607 = vld [vmem:[%s3 + $0x2c] sm:$0xf]
        %v608 = vld [vmem:[%s3 + $0x30] sm:$0xf]
        %v609 = vld [vmem:[%s3 + $0x34] sm:$0xf]
        %v610 = vld [vmem:[%s3 + $0x38] sm:$0xf]
        %v611 = vld [vmem:[%s3 + $0x3c] sm:$0xf]
        %v628 = vunpack.c.l.b16 %v556
        %v629 = vunpack.c.l.b16 %v557
        %v630 = vunpack.c.l.b16 %v558
        %v631 = vunpack.c.l.b16 %v559
        %v632 = vunpack.c.l.b16 %v560
        %v633 = vunpack.c.l.b16 %v561
        %v634 = vunpack.c.l.b16 %v562
        %v635 = vunpack.c.l.b16 %v563
        %v636 = vunpack.c.l.b16 %v564
        %v637 = vunpack.c.l.b16 %v565
        %v638 = vunpack.c.l.b16 %v566
        %v639 = vunpack.c.l.b16 %v567
        %v640 = vunpack.c.l.b16 %v568
        %v641 = vunpack.c.l.b16 %v569
        %v642 = vunpack.c.l.b16 %v570
        %v643 = vunpack.c.l.b16 %v571
        %v644 = vpack.c.b16 %v629, %v628
        %v645 = vpack.c.b16 %v631, %v630
        %v646 = vpack.c.b16 %v633, %v632
        %v647 = vpack.c.b16 %v635, %v634
        %v648 = vpack.c.b16 %v637, %v636
        %v649 = vpack.c.b16 %v639, %v638
        %v650 = vpack.c.b16 %v641, %v640
        %v651 = vpack.c.b16 %v643, %v642
        %v676 = vunpack.c.l.b16 %v596
        %v677 = vunpack.c.l.b16 %v597
        %v678 = vunpack.c.l.b16 %v598
        %v679 = vunpack.c.l.b16 %v599
        %v680 = vunpack.c.l.b16 %v600
        %v681 = vunpack.c.l.b16 %v601
        %v682 = vunpack.c.l.b16 %v602
        %v683 = vunpack.c.l.b16 %v603
        %v684 = vunpack.c.l.b16 %v604
        %v685 = vunpack.c.l.b16 %v605
        %v686 = vunpack.c.l.b16 %v606
        %v687 = vunpack.c.l.b16 %v607
        %v688 = vunpack.c.l.b16 %v608
        %v689 = vunpack.c.l.b16 %v609
        %v690 = vunpack.c.l.b16 %v610
        %v691 = vunpack.c.l.b16 %v611
        %v692 = vpack.c.b16 %v677, %v676
        %v693 = vpack.c.b16 %v679, %v678
        %v694 = vpack.c.b16 %v681, %v680
        %v695 = vpack.c.b16 %v683, %v682
        %v696 = vpack.c.b16 %v685, %v684
        %v697 = vpack.c.b16 %v687, %v686
        %v698 = vpack.c.b16 %v689, %v688
        %v699 = vpack.c.b16 %v691, %v690
        %708 = vmatprep.subr.bf16.mxu0 0
        %709 = vmatpush1.bf16.msra.mxu0 %v692
        %710 = vmatprep.subr.bf16.mxu0 0
        %711 = vmatpush1.bf16.msra.mxu0 %v693
        %712 = vmatprep.subr.bf16.mxu0 0
        %713 = vmatpush1.bf16.msra.mxu0 %v694
        %714 = vmatprep.subr.bf16.mxu0 0
        %715 = vmatpush1.bf16.msra.mxu0 %v695
        %716 = vmatprep.subr.bf16.mxu0 0
        %717 = vmatpush1.bf16.msra.mxu0 %v696
        %718 = vmatprep.subr.bf16.mxu0 0
        %719 = vmatpush1.bf16.msra.mxu0 %v697
        %720 = vmatprep.subr.bf16.mxu0 0
        %721 = vmatpush1.bf16.msra.mxu0 %v698
        %722 = vmatprep.subr.bf16.mxu0 0
        %723 = vmatpush1.bf16.msra.mxu0 %v699
        %724 = vmatprep.subr.bf16.mxu0 0
        %725 = vmatpush1.bf16.msra.mxu0 0
        %726 = vmatprep.subr.bf16.mxu0 0
        %727 = vmatpush1.bf16.msra.mxu0 0
        %728 = vmatprep.subr.bf16.mxu0 0
        %729 = vmatpush1.bf16.msra.mxu0 0
        %730 = vmatprep.subr.bf16.mxu0 0
        %731 = vmatpush1.bf16.msra.mxu0 0
        %732 = vmatprep.subr.bf16.mxu0 0
        %733 = vmatpush1.bf16.msra.mxu0 0
        %734 = vmatprep.subr.bf16.mxu0 0
        %735 = vmatpush1.bf16.msra.mxu0 0
        %736 = vmatprep.subr.bf16.mxu0 0
        %737 = vmatpush1.bf16.msra.mxu0 0
        %738 = vmatprep.subr.bf16.mxu0 0
        %739 = vmatpush1.bf16.msra.mxu0 0
        %740 = vmatprep.mubr.bf16.mxu0 0
        %741 = vmatmul.mubr.bf16.gmra.mrb[0].mxu0 %v644
        %v742 = vpop.f32.mrb[0].mxu0
        %v743 = vadd.f32 0.0, %v742
        %v744 = vpop.f32.mrb[0].mxu0
        %v745 = vpop.f32.mrb[0].mxu0
        %v746 = vadd.f32 0.0, %v745
        %v747 = vpop.f32.mrb[0].mxu0
        %748 = vmatprep.mubr.bf16.mxu0 0
        %749 = vmatmul.mubr.bf16.gmra.mrb[0].mxu0 %v645
        %v750 = vpop.f32.mrb[0].mxu0
        %v751 = vadd.f32 0.0, %v750
        %v752 = vpop.f32.mrb[0].mxu0
        %v753 = vpop.f32.mrb[0].mxu0
        %v754 = vadd.f32 0.0, %v753
        %v755 = vpop.f32.mrb[0].mxu0
        %756 = vmatprep.mubr.bf16.mxu0 0
        %757 = vmatmul.mubr.bf16.gmra.mrb[0].mxu0 %v646
        %v758 = vpop.f32.mrb[0].mxu0
        %v759 = vadd.f32 0.0, %v758
        %v760 = vpop.f32.mrb[0].mxu0
        %v761 = vpop.f32.mrb[0].mxu0
        %v762 = vadd.f32 0.0, %v761
        %v763 = vpop.f32.mrb[0].mxu0
        %764 = vmatprep.mubr.bf16.mxu0 0
        %765 = vmatmul.mubr.bf16.gmra.mrb[0].mxu0 %v647
        %v766 = vpop.f32.mrb[0].mxu0
        %v767 = vadd.f32 0.0, %v766
        %v768 = vpop.f32.mrb[0].mxu0
        %v769 = vpop.f32.mrb[0].mxu0
        %v770 = vadd.f32 0.0, %v769
        %v771 = vpop.f32.mrb[0].mxu0
        %772 = vmatprep.mubr.bf16.mxu0 0
        %773 = vmatmul.mubr.bf16.gmra.mrb[0].mxu0 %v648
        %v774 = vpop.f32.mrb[0].mxu0
        %v775 = vadd.f32 0.0, %v774
        %v776 = vpop.f32.mrb[0].mxu0
        %v777 = vpop.f32.mrb[0].mxu0
        %v778 = vadd.f32 0.0, %v777
        %v779 = vpop.f32.mrb[0].mxu0
        %780 = vmatprep.mubr.bf16.mxu0 0
        %781 = vmatmul.mubr.bf16.gmra.mrb[0].mxu0 %v649
        %v782 = vpop.f32.mrb[0].mxu0
        %v783 = vadd.f32 0.0, %v782
        %v784 = vpop.f32.mrb[0].mxu0
        %v785 = vpop.f32.mrb[0].mxu0
        %v786 = vadd.f32 0.0, %v785
        %v787 = vpop.f32.mrb[0].mxu0
        %788 = vmatprep.mubr.bf16.mxu0 0
        %789 = vmatmul.mubr.bf16.gmra.mrb[0].mxu0 %v650
        %v790 = vpop.f32.mrb[0].mxu0
        %v791 = vadd.f32 0.0, %v790
        %v792 = vpop.f32.mrb[0].mxu0
        %v793 = vpop.f32.mrb[0].mxu0
        %v794 = vadd.f32 0.0, %v793
        %v795 = vpop.f32.mrb[0].mxu0
        %796 = vmatprep.mubr.bf16.mxu0 0
        %797 = vmatmul.mubr.bf16.gmra.mrb[0].mxu0 %v651
        %v798 = vpop.f32.mrb[0].mxu0
        %v799 = vadd.f32 0.0, %v798
        %v800 = vpop.f32.mrb[0].mxu0
        %v801 = vpop.f32.mrb[0].mxu0
        %v802 = vadd.f32 0.0, %v801
        %v803 = vpop.f32.mrb[0].mxu0
        %804 = vdwg.mxu0
        %v821 = vunpack.c.l.b16 %v580
        %v822 = vunpack.c.l.b16 %v581
        %v823 = vunpack.c.l.b16 %v582
        %v824 = vunpack.c.l.b16 %v583
        %v825 = vunpack.c.l.b16 %v584
        %v826 = vunpack.c.l.b16 %v585
        %v827 = vunpack.c.l.b16 %v586
        %v828 = vunpack.c.l.b16 %v587
        %v829 = vunpack.c.l.b16 %v588
        %v830 = vunpack.c.l.b16 %v589
        %v831 = vunpack.c.l.b16 %v590
        %v832 = vunpack.c.l.b16 %v591
        %v833 = vunpack.c.l.b16 %v592
        %v834 = vunpack.c.l.b16 %v593
        %v835 = vunpack.c.l.b16 %v594
        %v836 = vunpack.c.l.b16 %v595
        %v837 = vpack.c.b16 %v822, %v821
        %v838 = vpack.c.b16 %v824, %v823
        %v839 = vpack.c.b16 %v826, %v825
        %v840 = vpack.c.b16 %v828, %v827
        %v841 = vpack.c.b16 %v830, %v829
        %v842 = vpack.c.b16 %v832, %v831
        %v843 = vpack.c.b16 %v834, %v833
        %v844 = vpack.c.b16 %v836, %v835
        %853 = vmatprep.subr.bf16.mxu0 0
        %854 = vmatpush1.bf16.msra.mxu0 %v837
        %855 = vmatprep.subr.bf16.mxu0 0
        %856 = vmatpush1.bf16.msra.mxu0 %v838
        %857 = vmatprep.subr.bf16.mxu0 0
        %858 = vmatpush1.bf16.msra.mxu0 %v839
        %859 = vmatprep.subr.bf16.mxu0 0
        %860 = vmatpush1.bf16.msra.mxu0 %v840
        %861 = vmatprep.subr.bf16.mxu0 0
        %862 = vmatpush1.bf16.msra.mxu0 %v841
        %863 = vmatprep.subr.bf16.mxu0 0
        %864 = vmatpush1.bf16.msra.mxu0 %v842
        %865 = vmatprep.subr.bf16.mxu0 0
        %866 = vmatpush1.bf16.msra.mxu0 %v843
        %867 = vmatprep.subr.bf16.mxu0 0
        %868 = vmatpush1.bf16.msra.mxu0 %v844
        %869 = vmatprep.subr.bf16.mxu0 0
        %870 = vmatpush1.bf16.msra.mxu0 0
        %871 = vmatprep.subr.bf16.mxu0 0
        %872 = vmatpush1.bf16.msra.mxu0 0
        %873 = vmatprep.subr.bf16.mxu0 0
        %874 = vmatpush1.bf16.msra.mxu0 0
        %875 = vmatprep.subr.bf16.mxu0 0
        %876 = vmatpush1.bf16.msra.mxu0 0
        %877 = vmatprep.subr.bf16.mxu0 0
        %878 = vmatpush1.bf16.msra.mxu0 0
        %879 = vmatprep.subr.bf16.mxu0 0
        %880 = vmatpush1.bf16.msra.mxu0 0
        %881 = vmatprep.subr.bf16.mxu0 0
        %882 = vmatpush1.bf16.msra.mxu0 0
        %883 = vmatprep.subr.bf16.mxu0 0
        %884 = vmatpush1.bf16.msra.mxu0 0
        %885 = vmatprep.mubr.bf16.mxu0 0
        %886 = vmatmul.mubr.bf16.gmra.mrb[0].mxu0 %v572
        %v887 = vpop.f32.mrb[0].mxu0
        %v888 = vadd.f32 %v743, %v887
        %v889 = vpop.f32.mrb[0].mxu0
        %v890 = vpop.f32.mrb[0].mxu0
        %v891 = vadd.f32 %v746, %v890
        %v892 = vpop.f32.mrb[0].mxu0
        %893 = vmatprep.mubr.bf16.mxu0 0
        %894 = vmatmul.mubr.bf16.gmra.mrb[0].mxu0 %v573
        %v895 = vpop.f32.mrb[0].mxu0
        %v896 = vadd.f32 %v751, %v895
        %v897 = vpop.f32.mrb[0].mxu0
        %v898 = vpop.f32.mrb[0].mxu0
        %v899 = vadd.f32 %v754, %v898
        %v900 = vpop.f32.mrb[0].mxu0
        %901 = vmatprep.mubr.bf16.mxu0 0
        %902 = vmatmul.mubr.bf16.gmra.mrb[0].mxu0 %v574
        %v903 = vpop.f32.mrb[0].mxu0
        %v904 = vadd.f32 %v759, %v903
        %v905 = vpop.f32.mrb[0].mxu0
        %v906 = vpop.f32.mrb[0].mxu0
        %v907 = vadd.f32 %v762, %v906
        %v908 = vpop.f32.mrb[0].mxu0
        %909 = vmatprep.mubr.bf16.mxu0 0
        %910 = vmatmul.mubr.bf16.gmra.mrb[0].mxu0 %v575
        %v911 = vpop.f32.mrb[0].mxu0
        %v912 = vadd.f32 %v767, %v911
        %v913 = vpop.f32.mrb[0].mxu0
        %v914 = vpop.f32.mrb[0].mxu0
        %v915 = vadd.f32 %v770, %v914
        %v916 = vpop.f32.mrb[0].mxu0
        %917 = vmatprep.mubr.bf16.mxu0 0
        %918 = vmatmul.mubr.bf16.gmra.mrb[0].mxu0 %v576
        %v919 = vpop.f32.mrb[0].mxu0
        %v920 = vadd.f32 %v775, %v919
        %v921 = vpop.f32.mrb[0].mxu0
        %v922 = vpop.f32.mrb[0].mxu0
        %v923 = vadd.f32 %v778, %v922
        %v924 = vpop.f32.mrb[0].mxu0
        %925 = vmatprep.mubr.bf16.mxu0 0
        %926 = vmatmul.mubr.bf16.gmra.mrb[0].mxu0 %v577
        %v927 = vpop.f32.mrb[0].mxu0
        %v928 = vadd.f32 %v783, %v927
        %v929 = vpop.f32.mrb[0].mxu0
        %v930 = vpop.f32.mrb[0].mxu0
        %v931 = vadd.f32 %v786, %v930
        %v932 = vpop.f32.mrb[0].mxu0
        %933 = vmatprep.mubr.bf16.mxu0 0
        %934 = vmatmul.mubr.bf16.gmra.mrb[0].mxu0 %v578
        %v935 = vpop.f32.mrb[0].mxu0
        %v936 = vadd.f32 %v791, %v935
        %v937 = vpop.f32.mrb[0].mxu0
        %v938 = vpop.f32.mrb[0].mxu0
        %v939 = vadd.f32 %v794, %v938
        %v940 = vpop.f32.mrb[0].mxu0
        %941 = vmatprep.mubr.bf16.mxu0 0
        %942 = vmatmul.mubr.bf16.gmra.mrb[0].mxu0 %v579
        %v943 = vpop.f32.mrb[0].mxu0
        %v944 = vadd.f32 %v799, %v943
        %v945 = vpop.f32.mrb[0].mxu0
        %v946 = vpop.f32.mrb[0].mxu0
        %v947 = vadd.f32 %v802, %v946
        %v948 = vpop.f32.mrb[0].mxu0
        %949 = vdwg.mxu0
        %v950 = vld [vmem:[%s4] sm:$0x1]
        %v952 = vlaneseq
        %v953 = vshrl.u32 %v952, 7
        %v954 = vsub.s32 0, %v953
        %v955 = vrot.slane %v950, %v954
        %v957 = vadd.f32 %v888, %v955
        %v958 = vadd.f32 %v891, %v955
        %v959 = vadd.f32 %v896, %v955
        %v960 = vadd.f32 %v899, %v955
        %v961 = vadd.f32 %v904, %v955
        %v962 = vadd.f32 %v907, %v955
        %v963 = vadd.f32 %v912, %v955
        %v964 = vadd.f32 %v915, %v955
        %v965 = vadd.f32 %v920, %v955
        %v966 = vadd.f32 %v923, %v955
        %v967 = vadd.f32 %v928, %v955
        %v968 = vadd.f32 %v931, %v955
        %v969 = vadd.f32 %v936, %v955
        %v970 = vadd.f32 %v939, %v955
        %v971 = vadd.f32 %v944, %v955
        %v972 = vadd.f32 %v947, %v955
        %v973 = vmul.f32 %v957, %v957
        %v974 = vmul.f32 %v958, %v958
        %v975 = vmul.f32 %v959, %v959
        %v976 = vmul.f32 %v960, %v960
        %v977 = vmul.f32 %v961, %v961
        %v978 = vmul.f32 %v962, %v962
        %v979 = vmul.f32 %v963, %v963
        %v980 = vmul.f32 %v964, %v964
        %v981 = vmul.f32 %v965, %v965
        %v982 = vmul.f32 %v966, %v966
        %v983 = vmul.f32 %v967, %v967
        %v984 = vmul.f32 %v968, %v968
        %v985 = vmul.f32 %v969, %v969
        %v986 = vmul.f32 %v970, %v970
        %v987 = vmul.f32 %v971, %v971
        %v988 = vmul.f32 %v972, %v972
        %989 = vadd.xlane.f32.xlu0 %v973
        %v990 = vpop.xlane.xlu0 %989
        %991 = vadd.xlane.f32.xlu0 %v974
        %v992 = vpop.xlane.xlu0 %991
        %993 = vadd.xlane.f32.xlu0 %v975
        %v994 = vpop.xlane.xlu0 %993
        %995 = vadd.xlane.f32.xlu0 %v976
        %v996 = vpop.xlane.xlu0 %995
        %997 = vadd.xlane.f32.xlu0 %v977
        %v998 = vpop.xlane.xlu0 %997
        %999 = vadd.xlane.f32.xlu0 %v978
        %v1000 = vpop.xlane.xlu0 %999
        %1001 = vadd.xlane.f32.xlu0 %v979
        %v1002 = vpop.xlane.xlu0 %1001
        %1003 = vadd.xlane.f32.xlu0 %v980
        %v1004 = vpop.xlane.xlu0 %1003
        %1005 = vadd.xlane.f32.xlu0 %v981
        %v1006 = vpop.xlane.xlu0 %1005
        %1007 = vadd.xlane.f32.xlu0 %v982
        %v1008 = vpop.xlane.xlu0 %1007
        %1009 = vadd.xlane.f32.xlu0 %v983
        %v1010 = vpop.xlane.xlu0 %1009
        %1011 = vadd.xlane.f32.xlu0 %v984
        %v1012 = vpop.xlane.xlu0 %1011
        %1013 = vadd.xlane.f32.xlu0 %v985
        %v1014 = vpop.xlane.xlu0 %1013
        %1015 = vadd.xlane.f32.xlu0 %v986
        %v1016 = vpop.xlane.xlu0 %1015
        %1017 = vadd.xlane.f32.xlu0 %v987
        %v1018 = vpop.xlane.xlu0 %1017
        %1019 = vadd.xlane.f32.xlu0 %v988
        %v1020 = vpop.xlane.xlu0 %1019
        %v1021 = vmax.f32 %v990, 1e-24
        %v1022 = vmax.f32 %v992, 1e-24
        %v1023 = vmax.f32 %v994, 1e-24
        %v1024 = vmax.f32 %v996, 1e-24
        %v1025 = vmax.f32 %v998, 1e-24
        %v1026 = vmax.f32 %v1000, 1e-24
        %v1027 = vmax.f32 %v1002, 1e-24
        %v1028 = vmax.f32 %v1004, 1e-24
        %v1029 = vmax.f32 %v1006, 1e-24
        %v1030 = vmax.f32 %v1008, 1e-24
        %v1031 = vmax.f32 %v1010, 1e-24
        %v1032 = vmax.f32 %v1012, 1e-24
        %v1033 = vmax.f32 %v1014, 1e-24
        %v1034 = vmax.f32 %v1016, 1e-24
        %v1035 = vmax.f32 %v1018, 1e-24
        %v1036 = vmax.f32 %v1020, 1e-24
        %v1037 = vrsqrt.pop %v1021
        %v1038 = vrsqrt.pop %v1022
        %v1039 = vrsqrt.pop %v1023
        %v1040 = vrsqrt.pop %v1024
        %v1041 = vrsqrt.pop %v1025
        %v1042 = vrsqrt.pop %v1026
        %v1043 = vrsqrt.pop %v1027
        %v1044 = vrsqrt.pop %v1028
        %v1045 = vrsqrt.pop %v1029
        %v1046 = vrsqrt.pop %v1030
        %v1047 = vrsqrt.pop %v1031
        %v1048 = vrsqrt.pop %v1032
        %v1049 = vrsqrt.pop %v1033
        %v1050 = vrsqrt.pop %v1034
        %v1051 = vrsqrt.pop %v1035
        %v1052 = vrsqrt.pop %v1036
        %v1053 = vmul.f32 %v957, %v1037
        %v1054 = vmul.f32 %v958, %v1038
        %v1055 = vmul.f32 %v959, %v1039
        %v1056 = vmul.f32 %v960, %v1040
        %v1057 = vmul.f32 %v961, %v1041
        %v1058 = vmul.f32 %v962, %v1042
        %v1059 = vmul.f32 %v963, %v1043
        %v1060 = vmul.f32 %v964, %v1044
        %v1061 = vmul.f32 %v965, %v1045
        %v1062 = vmul.f32 %v966, %v1046
        %v1063 = vmul.f32 %v967, %v1047
        %v1064 = vmul.f32 %v968, %v1048
        %v1065 = vmul.f32 %v969, %v1049
        %v1066 = vmul.f32 %v970, %v1050
        %v1067 = vmul.f32 %v971, %v1051
        %v1068 = vmul.f32 %v972, %v1052
        %v1069 = vpack.c.bf16 %v1054, %v1053
        %v1070 = vpack.c.bf16 %v1056, %v1055
        %v1071 = vpack.c.bf16 %v1058, %v1057
        %v1072 = vpack.c.bf16 %v1060, %v1059
        %v1073 = vpack.c.bf16 %v1062, %v1061
        %v1074 = vpack.c.bf16 %v1064, %v1063
        %v1075 = vpack.c.bf16 %v1066, %v1065
        %v1076 = vpack.c.bf16 %v1068, %v1067
        %s1077 = sshra.s32 %s322, 4
        %s1078 = sand.u32 %s322, 15
        %s1079 = smul.addr %s1077, 8
        %s1080 = scalar_lea.vmem [#allocation2], %s1079
        %1081 = vst [vmem:[%s1080] sm:$0xff] %v1069
        %1082 = vst [vmem:[%s1080 + $0x8] sm:$0xff] %v1070
        %1083 = vst [vmem:[%s1080 + $0x10] sm:$0xff] %v1071
        %1084 = vst [vmem:[%s1080 + $0x18] sm:$0xff] %v1072
        %1085 = vst [vmem:[%s1080 + $0x20] sm:$0xff] %v1073
        %1086 = vst [vmem:[%s1080 + $0x28] sm:$0xff] %v1074
        %1087 = vst [vmem:[%s1080 + $0x30] sm:$0xff] %v1075
        %1088 = vst [vmem:[%s1080 + $0x38] sm:$0xff] %v1076
        %1089 = vst [vmem:[%s319] sm:$0xff] 0.0
        %1090 = vst [vmem:[%s319 + $0x8] sm:$0xff] 0.0
        %1091 = vst [vmem:[%s319 + $0x10] sm:$0xff] 0.0
        %1092 = vst [vmem:[%s319 + $0x18] sm:$0xff] 0.0
        %1093 = vst [vmem:[%s319 + $0x20] sm:$0xff] 0.0
        %1094 = vst [vmem:[%s319 + $0x28] sm:$0xff] 0.0
        %1095 = vst [vmem:[%s319 + $0x30] sm:$0xff] 0.0
        %1096 = vst [vmem:[%s319 + $0x38] sm:$0xff] 0.0
        %1097 = vst [vmem:[%s319 + $0x40] sm:$0xff] 0.0
        %1098 = vst [vmem:[%s319 + $0x48] sm:$0xff] 0.0
        %1099 = vst [vmem:[%s319 + $0x50] sm:$0xff] 0.0
        %1100 = vst [vmem:[%s319 + $0x58] sm:$0xff] 0.0
        %1101 = vst [vmem:[%s319 + $0x60] sm:$0xff] 0.0
        %1102 = vst [vmem:[%s319 + $0x68] sm:$0xff] 0.0
        %1103 = vst [vmem:[%s319 + $0x70] sm:$0xff] 0.0
        %1104 = vst [vmem:[%s319 + $0x78] sm:$0xff] 0.0
      $region56: #{sage_decoder_forward.1} parent=51 // pred_fallthru
        _
      %p1105 = scmp.eq.s32.totalorder %s23, 1
      // Predicated region
      $region57: #{sage_decoder_forward.1} parent=51 // pred_check
        %p1106 = pneg %p1105
      $region58: #{sage_decoder_forward.1} parent=51 // pred_check_branch
        %1108 = sbr.rel (%p1106) target = $region60
      $region59: #{sage_decoder_forward.1} parent=51 // pred_region
        %v1109 = vld [vmem:[#allocation2] sm:$0xff]
        %v1110 = vld [vmem:[#allocation2 + $0x8] sm:$0xff]
        %v1111 = vld [vmem:[#allocation2 + $0x10] sm:$0xff]
        %v1112 = vld [vmem:[#allocation2 + $0x18] sm:$0xff]
        %v1113 = vld [vmem:[#allocation2 + $0x20] sm:$0xff]
        %v1114 = vld [vmem:[#allocation2 + $0x28] sm:$0xff]
        %v1115 = vld [vmem:[#allocation2 + $0x30] sm:$0xff]
        %v1116 = vld [vmem:[#allocation2 + $0x38] sm:$0xff]
        %v1133 = vunpack.c.l.b16 %v323
        %v1134 = vunpack.c.l.b16 %v324
        %v1135 = vunpack.c.l.b16 %v325
        %v1136 = vunpack.c.l.b16 %v326
        %v1137 = vunpack.c.l.b16 %v327
        %v1138 = vunpack.c.l.b16 %v328
        %v1139 = vunpack.c.l.b16 %v329
        %v1140 = vunpack.c.l.b16 %v330
        %v1141 = vunpack.c.l.b16 %v331
        %v1142 = vunpack.c.l.b16 %v332
        %v1143 = vunpack.c.l.b16 %v333
        %v1144 = vunpack.c.l.b16 %v334
        %v1145 = vunpack.c.l.b16 %v335
        %v1146 = vunpack.c.l.b16 %v336
        %v1147 = vunpack.c.l.b16 %v337
        %v1148 = vunpack.c.l.b16 %v338
        %v1149 = vpack.c.b16 %v1134, %v1133
        %v1150 = vpack.c.b16 %v1136, %v1135
        %v1151 = vpack.c.b16 %v1138, %v1137
        %v1152 = vpack.c.b16 %v1140, %v1139
        %v1153 = vpack.c.b16 %v1142, %v1141
        %v1154 = vpack.c.b16 %v1144, %v1143
        %v1155 = vpack.c.b16 %v1146, %v1145
        %v1156 = vpack.c.b16 %v1148, %v1147
        %1165 = vmatprep.subr.bf16.mxu0 0
        %1166 = vmatpush1.bf16.msra.mxu0 %v1109
        %1167 = vmatprep.subr.bf16.mxu0 0
        %1168 = vmatpush1.bf16.msra.mxu0 %v1110
        %1169 = vmatprep.subr.bf16.mxu0 0
        %1170 = vmatpush1.bf16.msra.mxu0 %v1111
        %1171 = vmatprep.subr.bf16.mxu0 0
        %1172 = vmatpush1.bf16.msra.mxu0 %v1112
        %1173 = vmatprep.subr.bf16.mxu0 0
        %1174 = vmatpush1.bf16.msra.mxu0 %v1113
        %1175 = vmatprep.subr.bf16.mxu0 0
        %1176 = vmatpush1.bf16.msra.mxu0 %v1114
        %1177 = vmatprep.subr.bf16.mxu0 0
        %1178 = vmatpush1.bf16.msra.mxu0 %v1115
        %1179 = vmatprep.subr.bf16.mxu0 0
        %1180 = vmatpush1.bf16.msra.mxu0 %v1116
        %1181 = vmatprep.subr.bf16.mxu0 0
        %1182 = vmatpush1.bf16.msra.mxu0 0
        %1183 = vmatprep.subr.bf16.mxu0 0
        %1184 = vmatpush1.bf16.msra.mxu0 0
        %1185 = vmatprep.subr.bf16.mxu0 0
        %1186 = vmatpush1.bf16.msra.mxu0 0
        %1187 = vmatprep.subr.bf16.mxu0 0
        %1188 = vmatpush1.bf16.msra.mxu0 0
        %1189 = vmatprep.subr.bf16.mxu0 0
        %1190 = vmatpush1.bf16.msra.mxu0 0
        %1191 = vmatprep.subr.bf16.mxu0 0
        %1192 = vmatpush1.bf16.msra.mxu0 0
        %1193 = vmatprep.subr.bf16.mxu0 0
        %1194 = vmatpush1.bf16.msra.mxu0 0
        %1195 = vmatprep.subr.bf16.mxu0 0
        %1196 = vmatpush1.bf16.msra.mxu0 0
        %1197 = vmatprep.mubr.bf16.mxu0 0
        %1198 = vmatmul.mubr.bf16.gmra.mrb[0].mxu0 %v1149
        %v1199 = vpop.f32.mrb[0].mxu0
        %v1200 = vadd.f32 0.0, %v1199
        %v1201 = vpop.f32.mrb[0].mxu0
        %v1202 = vpop.f32.mrb[0].mxu0
        %v1203 = vadd.f32 0.0, %v1202
        %v1204 = vpop.f32.mrb[0].mxu0
        %1205 = vmatprep.mubr.bf16.mxu0 0
        %1206 = vmatmul.mubr.bf16.gmra.mrb[0].mxu0 %v1150
        %v1207 = vpop.f32.mrb[0].mxu0
        %v1208 = vadd.f32 0.0, %v1207
        %v1209 = vpop.f32.mrb[0].mxu0
        %v1210 = vpop.f32.mrb[0].mxu0
        %v1211 = vadd.f32 0.0, %v1210
        %v1212 = vpop.f32.mrb[0].mxu0
        %1213 = vmatprep.mubr.bf16.mxu0 0
        %1214 = vmatmul.mubr.bf16.gmra.mrb[0].mxu0 %v1151
        %v1215 = vpop.f32.mrb[0].mxu0
        %v1216 = vadd.f32 0.0, %v1215
        %v1217 = vpop.f32.mrb[0].mxu0
        %v1218 = vpop.f32.mrb[0].mxu0
        %v1219 = vadd.f32 0.0, %v1218
        %v1220 = vpop.f32.mrb[0].mxu0
        %1221 = vmatprep.mubr.bf16.mxu0 0
        %1222 = vmatmul.mubr.bf16.gmra.mrb[0].mxu0 %v1152
        %v1223 = vpop.f32.mrb[0].mxu0
        %v1224 = vadd.f32 0.0, %v1223
        %v1225 = vpop.f32.mrb[0].mxu0
        %v1226 = vpop.f32.mrb[0].mxu0
        %v1227 = vadd.f32 0.0, %v1226
        %v1228 = vpop.f32.mrb[0].mxu0
        %1229 = vmatprep.mubr.bf16.mxu0 0
        %1230 = vmatmul.mubr.bf16.gmra.mrb[0].mxu0 %v1153
        %v1231 = vpop.f32.mrb[0].mxu0
        %v1232 = vadd.f32 0.0, %v1231
        %v1233 = vpop.f32.mrb[0].mxu0
        %v1234 = vpop.f32.mrb[0].mxu0
        %v1235 = vadd.f32 0.0, %v1234
        %v1236 = vpop.f32.mrb[0].mxu0
        %1237 = vmatprep.mubr.bf16.mxu0 0
        %1238 = vmatmul.mubr.bf16.gmra.mrb[0].mxu0 %v1154
        %v1239 = vpop.f32.mrb[0].mxu0
        %v1240 = vadd.f32 0.0, %v1239
        %v1241 = vpop.f32.mrb[0].mxu0
        %v1242 = vpop.f32.mrb[0].mxu0
        %v1243 = vadd.f32 0.0, %v1242
        %v1244 = vpop.f32.mrb[0].mxu0
        %1245 = vmatprep.mubr.bf16.mxu0 0
        %1246 = vmatmul.mubr.bf16.gmra.mrb[0].mxu0 %v1155
        %v1247 = vpop.f32.mrb[0].mxu0
        %v1248 = vadd.f32 0.0, %v1247
        %v1249 = vpop.f32.mrb[0].mxu0
        %v1250 = vpop.f32.mrb[0].mxu0
        %v1251 = vadd.f32 0.0, %v1250
        %v1252 = vpop.f32.mrb[0].mxu0
        %1253 = vmatprep.mubr.bf16.mxu0 0
        %1254 = vmatmul.mubr.bf16.gmra.mrb[0].mxu0 %v1156
        %v1255 = vpop.f32.mrb[0].mxu0
        %v1256 = vadd.f32 0.0, %v1255
        %v1257 = vpop.f32.mrb[0].mxu0
        %v1258 = vpop.f32.mrb[0].mxu0
        %v1259 = vadd.f32 0.0, %v1258
        %v1260 = vpop.f32.mrb[0].mxu0
        %1261 = vdwg.mxu0
        %s1262 = sshra.s32 %s322, 4
        %s1263 = sand.u32 %s322, 15
        %s1264 = smul.addr %s1262, 8
        %s1265 = scalar_lea.vmem [#allocation2], %s1264
        %v1266 = vld [vmem:[%s1265] sm:$0xff]
        %v1267 = vld [vmem:[%s1265 + $0x8] sm:$0xff]
        %v1268 = vld [vmem:[%s1265 + $0x10] sm:$0xff]
        %v1269 = vld [vmem:[%s1265 + $0x18] sm:$0xff]
        %v1270 = vld [vmem:[%s1265 + $0x20] sm:$0xff]
        %v1271 = vld [vmem:[%s1265 + $0x28] sm:$0xff]
        %v1272 = vld [vmem:[%s1265 + $0x30] sm:$0xff]
        %v1273 = vld [vmem:[%s1265 + $0x38] sm:$0xff]
        %v1274 = vpack.c.bf16 %v1203, %v1200
        %v1275 = vpack.c.bf16 %v1211, %v1208
        %v1276 = vpack.c.bf16 %v1219, %v1216
        %v1277 = vpack.c.bf16 %v1227, %v1224
        %v1278 = vpack.c.bf16 %v1235, %v1232
        %v1279 = vpack.c.bf16 %v1243, %v1240
        %v1280 = vpack.c.bf16 %v1251, %v1248
        %v1281 = vpack.c.bf16 %v1259, %v1256
        %v1282 = vld [vmem:[%s5] sm:$0xf]
        %v1283 = vld [vmem:[%s5 + $0x4] sm:$0xf]
        %v1284 = vld [vmem:[%s5 + $0x8] sm:$0xf]
        %v1285 = vld [vmem:[%s5 + $0xc] sm:$0xf]
        %v1286 = vld [vmem:[%s5 + $0x10] sm:$0xf]
        %v1287 = vld [vmem:[%s5 + $0x14] sm:$0xf]
        %v1288 = vld [vmem:[%s5 + $0x18] sm:$0xf]
        %v1289 = vld [vmem:[%s5 + $0x1c] sm:$0xf]
        %v1290 = vld [vmem:[%s5 + $0x20] sm:$0xf]
        %v1291 = vld [vmem:[%s5 + $0x24] sm:$0xf]
        %v1292 = vld [vmem:[%s5 + $0x28] sm:$0xf]
        %v1293 = vld [vmem:[%s5 + $0x2c] sm:$0xf]
        %v1294 = vld [vmem:[%s5 + $0x30] sm:$0xf]
        %v1295 = vld [vmem:[%s5 + $0x34] sm:$0xf]
        %v1296 = vld [vmem:[%s5 + $0x38] sm:$0xf]
        %v1297 = vld [vmem:[%s5 + $0x3c] sm:$0xf]
        %v1298 = vld [vmem:[%s6] sm:$0xf]
        %v1299 = vld [vmem:[%s6 + $0x4] sm:$0xf]
        %v1300 = vld [vmem:[%s6 + $0x8] sm:$0xf]
        %v1301 = vld [vmem:[%s6 + $0xc] sm:$0xf]
        %v1302 = vld [vmem:[%s6 + $0x10] sm:$0xf]
        %v1303 = vld [vmem:[%s6 + $0x14] sm:$0xf]
        %v1304 = vld [vmem:[%s6 + $0x18] sm:$0xf]
        %v1305 = vld [vmem:[%s6 + $0x1c] sm:$0xf]
        %v1306 = vld [vmem:[%s6 + $0x20] sm:$0xf]
        %v1307 = vld [vmem:[%s6 + $0x24] sm:$0xf]
        %v1308 = vld [vmem:[%s6 + $0x28] sm:$0xf]
        %v1309 = vld [vmem:[%s6 + $0x2c] sm:$0xf]
        %v1310 = vld [vmem:[%s6 + $0x30] sm:$0xf]
        %v1311 = vld [vmem:[%s6 + $0x34] sm:$0xf]
        %v1312 = vld [vmem:[%s6 + $0x38] sm:$0xf]
        %v1313 = vld [vmem:[%s6 + $0x3c] sm:$0xf]
        %v1330 = vunpack.c.l.b16 %v1298
        %v1331 = vunpack.c.l.b16 %v1299
        %v1332 = vunpack.c.l.b16 %v1300
        %v1333 = vunpack.c.l.b16 %v1301
        %v1334 = vunpack.c.l.b16 %v1302
        %v1335 = vunpack.c.l.b16 %v1303
        %v1336 = vunpack.c.l.b16 %v1304
        %v1337 = vunpack.c.l.b16 %v1305
        %v1338 = vunpack.c.l.b16 %v1306
        %v1339 = vunpack.c.l.b16 %v1307
        %v1340 = vunpack.c.l.b16 %v1308
        %v1341 = vunpack.c.l.b16 %v1309
        %v1342 = vunpack.c.l.b16 %v1310
        %v1343 = vunpack.c.l.b16 %v1311
        %v1344 = vunpack.c.l.b16 %v1312
        %v1345 = vunpack.c.l.b16 %v1313
        %v1346 = vpack.c.b16 %v1331, %v1330
        %v1347 = vpack.c.b16 %v1333, %v1332
        %v1348 = vpack.c.b16 %v1335, %v1334
        %v1349 = vpack.c.b16 %v1337, %v1336
        %v1350 = vpack.c.b16 %v1339, %v1338
        %v1351 = vpack.c.b16 %v1341, %v1340
        %v1352 = vpack.c.b16 %v1343, %v1342
        %v1353 = vpack.c.b16 %v1345, %v1344
        %1362 = vmatprep.subr.bf16.mxu0 0
        %1363 = vmatpush1.bf16.msra.mxu0 %v1346
        %1364 = vmatprep.subr.bf16.mxu0 0
        %1365 = vmatpush1.bf16.msra.mxu0 %v1347
        %1366 = vmatprep.subr.bf16.mxu0 0
        %1367 = vmatpush1.bf16.msra.mxu0 %v1348
        %1368 = vmatprep.subr.bf16.mxu0 0
        %1369 = vmatpush1.bf16.msra.mxu0 %v1349
        %1370 = vmatprep.subr.bf16.mxu0 0
        %1371 = vmatpush1.bf16.msra.mxu0 %v1350
        %1372 = vmatprep.subr.bf16.mxu0 0
        %1373 = vmatpush1.bf16.msra.mxu0 %v1351
        %1374 = vmatprep.subr.bf16.mxu0 0
        %1375 = vmatpush1.bf16.msra.mxu0 %v1352
        %1376 = vmatprep.subr.bf16.mxu0 0
        %1377 = vmatpush1.bf16.msra.mxu0 %v1353
        %1378 = vmatprep.subr.bf16.mxu0 0
        %1379 = vmatpush1.bf16.msra.mxu0 0
        %1380 = vmatprep.subr.bf16.mxu0 0
        %1381 = vmatpush1.bf16.msra.mxu0 0
        %1382 = vmatprep.subr.bf16.mxu0 0
        %1383 = vmatpush1.bf16.msra.mxu0 0
        %1384 = vmatprep.subr.bf16.mxu0 0
        %1385 = vmatpush1.bf16.msra.mxu0 0
        %1386 = vmatprep.subr.bf16.mxu0 0
        %1387 = vmatpush1.bf16.msra.mxu0 0
        %1388 = vmatprep.subr.bf16.mxu0 0
        %1389 = vmatpush1.bf16.msra.mxu0 0
        %1390 = vmatprep.subr.bf16.mxu0 0
        %1391 = vmatpush1.bf16.msra.mxu0 0
        %1392 = vmatprep.subr.bf16.mxu0 0
        %1393 = vmatpush1.bf16.msra.mxu0 0
        %1394 = vmatprep.mubr.bf16.mxu0 0
        %1395 = vmatmul.mubr.bf16.gmra.mrb[0].mxu0 %v1266
        %v1396 = vpop.f32.mrb[0].mxu0
        %v1397 = vadd.f32 0.0, %v1396
        %v1398 = vpop.f32.mrb[0].mxu0
        %v1399 = vpop.f32.mrb[0].mxu0
        %v1400 = vadd.f32 0.0, %v1399
        %v1401 = vpop.f32.mrb[0].mxu0
        %1402 = vmatprep.mubr.bf16.mxu0 0
        %1403 = vmatmul.mubr.bf16.gmra.mrb[0].mxu0 %v1267
        %v1404 = vpop.f32.mrb[0].mxu0
        %v1405 = vadd.f32 0.0, %v1404
        %v1406 = vpop.f32.mrb[0].mxu0
        %v1407 = vpop.f32.mrb[0].mxu0
        %v1408 = vadd.f32 0.0, %v1407
        %v1409 = vpop.f32.mrb[0].mxu0
        %1410 = vmatprep.mubr.bf16.mxu0 0
        %1411 = vmatmul.mubr.bf16.gmra.mrb[0].mxu0 %v1268
        %v1412 = vpop.f32.mrb[0].mxu0
        %v1413 = vadd.f32 0.0, %v1412
        %v1414 = vpop.f32.mrb[0].mxu0
        %v1415 = vpop.f32.mrb[0].mxu0
        %v1416 = vadd.f32 0.0, %v1415
        %v1417 = vpop.f32.mrb[0].mxu0
        %1418 = vmatprep.mubr.bf16.mxu0 0
        %1419 = vmatmul.mubr.bf16.gmra.mrb[0].mxu0 %v1269
        %v1420 = vpop.f32.mrb[0].mxu0
        %v1421 = vadd.f32 0.0, %v1420
        %v1422 = vpop.f32.mrb[0].mxu0
        %v1423 = vpop.f32.mrb[0].mxu0
        %v1424 = vadd.f32 0.0, %v1423
        %v1425 = vpop.f32.mrb[0].mxu0
        %1426 = vmatprep.mubr.bf16.mxu0 0
        %1427 = vmatmul.mubr.bf16.gmra.mrb[0].mxu0 %v1270
        %v1428 = vpop.f32.mrb[0].mxu0
        %v1429 = vadd.f32 0.0, %v1428
        %v1430 = vpop.f32.mrb[0].mxu0
        %v1431 = vpop.f32.mrb[0].mxu0
        %v1432 = vadd.f32 0.0, %v1431
        %v1433 = vpop.f32.mrb[0].mxu0
        %1434 = vmatprep.mubr.bf16.mxu0 0
        %1435 = vmatmul.mubr.bf16.gmra.mrb[0].mxu0 %v1271
        %v1436 = vpop.f32.mrb[0].mxu0
        %v1437 = vadd.f32 0.0, %v1436
        %v1438 = vpop.f32.mrb[0].mxu0
        %v1439 = vpop.f32.mrb[0].mxu0
        %v1440 = vadd.f32 0.0, %v1439
        %v1441 = vpop.f32.mrb[0].mxu0
        %1442 = vmatprep.mubr.bf16.mxu0 0
        %1443 = vmatmul.mubr.bf16.gmra.mrb[0].mxu0 %v1272
        %v1444 = vpop.f32.mrb[0].mxu0
        %v1445 = vadd.f32 0.0, %v1444
        %v1446 = vpop.f32.mrb[0].mxu0
        %v1447 = vpop.f32.mrb[0].mxu0
        %v1448 = vadd.f32 0.0, %v1447
        %v1449 = vpop.f32.mrb[0].mxu0
        %1450 = vmatprep.mubr.bf16.mxu0 0
        %1451 = vmatmul.mubr.bf16.gmra.mrb[0].mxu0 %v1273
        %v1452 = vpop.f32.mrb[0].mxu0
        %v1453 = vadd.f32 0.0, %v1452
        %v1454 = vpop.f32.mrb[0].mxu0
        %v1455 = vpop.f32.mrb[0].mxu0
        %v1456 = vadd.f32 0.0, %v1455
        %v1457 = vpop.f32.mrb[0].mxu0
        %1458 = vdwg.mxu0
        %v1475 = vunpack.c.l.b16 %v1282
        %v1476 = vunpack.c.l.b16 %v1283
        %v1477 = vunpack.c.l.b16 %v1284
        %v1478 = vunpack.c.l.b16 %v1285
        %v1479 = vunpack.c.l.b16 %v1286
        %v1480 = vunpack.c.l.b16 %v1287
        %v1481 = vunpack.c.l.b16 %v1288
        %v1482 = vunpack.c.l.b16 %v1289
        %v1483 = vunpack.c.l.b16 %v1290
        %v1484 = vunpack.c.l.b16 %v1291
        %v1485 = vunpack.c.l.b16 %v1292
        %v1486 = vunpack.c.l.b16 %v1293
        %v1487 = vunpack.c.l.b16 %v1294
        %v1488 = vunpack.c.l.b16 %v1295
        %v1489 = vunpack.c.l.b16 %v1296
        %v1490 = vunpack.c.l.b16 %v1297
        %v1491 = vpack.c.b16 %v1476, %v1475
        %v1492 = vpack.c.b16 %v1478, %v1477
        %v1493 = vpack.c.b16 %v1480, %v1479
        %v1494 = vpack.c.b16 %v1482, %v1481
        %v1495 = vpack.c.b16 %v1484, %v1483
        %v1496 = vpack.c.b16 %v1486, %v1485
        %v1497 = vpack.c.b16 %v1488, %v1487
        %v1498 = vpack.c.b16 %v1490, %v1489
        %1507 = vmatprep.subr.bf16.mxu0 0
        %1508 = vmatpush1.bf16.msra.mxu0 %v1491
        %1509 = vmatprep.subr.bf16.mxu0 0
        %1510 = vmatpush1.bf16.msra.mxu0 %v1492
        %1511 = vmatprep.subr.bf16.mxu0 0
        %1512 = vmatpush1.bf16.msra.mxu0 %v1493
        %1513 = vmatprep.subr.bf16.mxu0 0
        %1514 = vmatpush1.bf16.msra.mxu0 %v1494
        %1515 = vmatprep.subr.bf16.mxu0 0
        %1516 = vmatpush1.bf16.msra.mxu0 %v1495
        %1517 = vmatprep.subr.bf16.mxu0 0
        %1518 = vmatpush1.bf16.msra.mxu0 %v1496
        %1519 = vmatprep.subr.bf16.mxu0 0
        %1520 = vmatpush1.bf16.msra.mxu0 %v1497
        %1521 = vmatprep.subr.bf16.mxu0 0
        %1522 = vmatpush1.bf16.msra.mxu0 %v1498
        %1523 = vmatprep.subr.bf16.mxu0 0
        %1524 = vmatpush1.bf16.msra.mxu0 0
        %1525 = vmatprep.subr.bf16.mxu0 0
        %1526 = vmatpush1.bf16.msra.mxu0 0
        %1527 = vmatprep.subr.bf16.mxu0 0
        %1528 = vmatpush1.bf16.msra.mxu0 0
        %1529 = vmatprep.subr.bf16.mxu0 0
        %1530 = vmatpush1.bf16.msra.mxu0 0
        %1531 = vmatprep.subr.bf16.mxu0 0
        %1532 = vmatpush1.bf16.msra.mxu0 0
        %1533 = vmatprep.subr.bf16.mxu0 0
        %1534 = vmatpush1.bf16.msra.mxu0 0
        %1535 = vmatprep.subr.bf16.mxu0 0
        %1536 = vmatpush1.bf16.msra.mxu0 0
        %1537 = vmatprep.subr.bf16.mxu0 0
        %1538 = vmatpush1.bf16.msra.mxu0 0
        %1539 = vmatprep.mubr.bf16.mxu0 0
        %1540 = vmatmul.mubr.bf16.gmra.mrb[0].mxu0 %v1274
        %v1541 = vpop.f32.mrb[0].mxu0
        %v1542 = vadd.f32 %v1397, %v1541
        %v1543 = vpop.f32.mrb[0].mxu0
        %v1544 = vpop.f32.mrb[0].mxu0
        %v1545 = vadd.f32 %v1400, %v1544
        %v1546 = vpop.f32.mrb[0].mxu0
        %1547 = vmatprep.mubr.bf16.mxu0 0
        %1548 = vmatmul.mubr.bf16.gmra.mrb[0].mxu0 %v1275
        %v1549 = vpop.f32.mrb[0].mxu0
        %v1550 = vadd.f32 %v1405, %v1549
        %v1551 = vpop.f32.mrb[0].mxu0
        %v1552 = vpop.f32.mrb[0].mxu0
        %v1553 = vadd.f32 %v1408, %v1552
        %v1554 = vpop.f32.mrb[0].mxu0
        %1555 = vmatprep.mubr.bf16.mxu0 0
        %1556 = vmatmul.mubr.bf16.gmra.mrb[0].mxu0 %v1276
        %v1557 = vpop.f32.mrb[0].mxu0
        %v1558 = vadd.f32 %v1413, %v1557
        %v1559 = vpop.f32.mrb[0].mxu0
        %v1560 = vpop.f32.mrb[0].mxu0
        %v1561 = vadd.f32 %v1416, %v1560
        %v1562 = vpop.f32.mrb[0].mxu0
        %1563 = vmatprep.mubr.bf16.mxu0 0
        %1564 = vmatmul.mubr.bf16.gmra.mrb[0].mxu0 %v1277
        %v1565 = vpop.f32.mrb[0].mxu0
        %v1566 = vadd.f32 %v1421, %v1565
        %v1567 = vpop.f32.mrb[0].mxu0
        %v1568 = vpop.f32.mrb[0].mxu0
        %v1569 = vadd.f32 %v1424, %v1568
        %v1570 = vpop.f32.mrb[0].mxu0
        %1571 = vmatprep.mubr.bf16.mxu0 0
        %1572 = vmatmul.mubr.bf16.gmra.mrb[0].mxu0 %v1278
        %v1573 = vpop.f32.mrb[0].mxu0
        %v1574 = vadd.f32 %v1429, %v1573
        %v1575 = vpop.f32.mrb[0].mxu0
        %v1576 = vpop.f32.mrb[0].mxu0
        %v1577 = vadd.f32 %v1432, %v1576
        %v1578 = vpop.f32.mrb[0].mxu0
        %1579 = vmatprep.mubr.bf16.mxu0 0
        %1580 = vmatmul.mubr.bf16.gmra.mrb[0].mxu0 %v1279
        %v1581 = vpop.f32.mrb[0].mxu0
        %v1582 = vadd.f32 %v1437, %v1581
        %v1583 = vpop.f32.mrb[0].mxu0
        %v1584 = vpop.f32.mrb[0].mxu0
        %v1585 = vadd.f32 %v1440, %v1584
        %v1586 = vpop.f32.mrb[0].mxu0
        %1587 = vmatprep.mubr.bf16.mxu0 0
        %1588 = vmatmul.mubr.bf16.gmra.mrb[0].mxu0 %v1280
        %v1589 = vpop.f32.mrb[0].mxu0
        %v1590 = vadd.f32 %v1445, %v1589
        %v1591 = vpop.f32.mrb[0].mxu0
        %v1592 = vpop.f32.mrb[0].mxu0
        %v1593 = vadd.f32 %v1448, %v1592
        %v1594 = vpop.f32.mrb[0].mxu0
        %1595 = vmatprep.mubr.bf16.mxu0 0
        %1596 = vmatmul.mubr.bf16.gmra.mrb[0].mxu0 %v1281
        %v1597 = vpop.f32.mrb[0].mxu0
        %v1598 = vadd.f32 %v1453, %v1597
        %v1599 = vpop.f32.mrb[0].mxu0
        %v1600 = vpop.f32.mrb[0].mxu0
        %v1601 = vadd.f32 %v1456, %v1600
        %v1602 = vpop.f32.mrb[0].mxu0
        %1603 = vdwg.mxu0
        %v1604 = vld [vmem:[%s7] sm:$0x1]
        %v1606 = vlaneseq
        %v1607 = vshrl.u32 %v1606, 7
        %v1608 = vsub.s32 0, %v1607
        %v1609 = vrot.slane %v1604, %v1608
        %v1611 = vadd.f32 %v1542, %v1609
        %v1612 = vadd.f32 %v1545, %v1609
        %v1613 = vadd.f32 %v1550, %v1609
        %v1614 = vadd.f32 %v1553, %v1609
        %v1615 = vadd.f32 %v1558, %v1609
        %v1616 = vadd.f32 %v1561, %v1609
        %v1617 = vadd.f32 %v1566, %v1609
        %v1618 = vadd.f32 %v1569, %v1609
        %v1619 = vadd.f32 %v1574, %v1609
        %v1620 = vadd.f32 %v1577, %v1609
        %v1621 = vadd.f32 %v1582, %v1609
        %v1622 = vadd.f32 %v1585, %v1609
        %v1623 = vadd.f32 %v1590, %v1609
        %v1624 = vadd.f32 %v1593, %v1609
        %v1625 = vadd.f32 %v1598, %v1609
        %v1626 = vadd.f32 %v1601, %v1609
        %v1627 = vmul.f32 %v1611, %v1611
        %v1628 = vmul.f32 %v1612, %v1612
        %v1629 = vmul.f32 %v1613, %v1613
        %v1630 = vmul.f32 %v1614, %v1614
        %v1631 = vmul.f32 %v1615, %v1615
        %v1632 = vmul.f32 %v1616, %v1616
        %v1633 = vmul.f32 %v1617, %v1617
        %v1634 = vmul.f32 %v1618, %v1618
        %v1635 = vmul.f32 %v1619, %v1619
        %v1636 = vmul.f32 %v1620, %v1620
        %v1637 = vmul.f32 %v1621, %v1621
        %v1638 = vmul.f32 %v1622, %v1622
        %v1639 = vmul.f32 %v1623, %v1623
        %v1640 = vmul.f32 %v1624, %v1624
        %v1641 = vmul.f32 %v1625, %v1625
        %v1642 = vmul.f32 %v1626, %v1626
        %1643 = vadd.xlane.f32.xlu0 %v1627
        %v1644 = vpop.xlane.xlu0 %1643
        %1645 = vadd.xlane.f32.xlu0 %v1628
        %v1646 = vpop.xlane.xlu0 %1645
        %1647 = vadd.xlane.f32.xlu0 %v1629
        %v1648 = vpop.xlane.xlu0 %1647
        %1649 = vadd.xlane.f32.xlu0 %v1630
        %v1650 = vpop.xlane.xlu0 %1649
        %1651 = vadd.xlane.f32.xlu0 %v1631
        %v1652 = vpop.xlane.xlu0 %1651
        %1653 = vadd.xlane.f32.xlu0 %v1632
        %v1654 = vpop.xlane.xlu0 %1653
        %1655 = vadd.xlane.f32.xlu0 %v1633
        %v1656 = vpop.xlane.xlu0 %1655
        %1657 = vadd.xlane.f32.xlu0 %v1634
        %v1658 = vpop.xlane.xlu0 %1657
        %1659 = vadd.xlane.f32.xlu0 %v1635
        %v1660 = vpop.xlane.xlu0 %1659
        %1661 = vadd.xlane.f32.xlu0 %v1636
        %v1662 = vpop.xlane.xlu0 %1661
        %1663 = vadd.xlane.f32.xlu0 %v1637
        %v1664 = vpop.xlane.xlu0 %1663
        %1665 = vadd.xlane.f32.xlu0 %v1638
        %v1666 = vpop.xlane.xlu0 %1665
        %1667 = vadd.xlane.f32.xlu0 %v1639
        %v1668 = vpop.xlane.xlu0 %1667
        %1669 = vadd.xlane.f32.xlu0 %v1640
        %v1670 = vpop.xlane.xlu0 %1669
        %1671 = vadd.xlane.f32.xlu0 %v1641
        %v1672 = vpop.xlane.xlu0 %1671
        %1673 = vadd.xlane.f32.xlu0 %v1642
        %v1674 = vpop.xlane.xlu0 %1673
        %v1675 = vmax.f32 %v1644, 1e-24
        %v1676 = vmax.f32 %v1646, 1e-24
        %v1677 = vmax.f32 %v1648, 1e-24
        %v1678 = vmax.f32 %v1650, 1e-24
        %v1679 = vmax.f32 %v1652, 1e-24
        %v1680 = vmax.f32 %v1654, 1e-24
        %v1681 = vmax.f32 %v1656, 1e-24
        %v1682 = vmax.f32 %v1658, 1e-24
        %v1683 = vmax.f32 %v1660, 1e-24
        %v1684 = vmax.f32 %v1662, 1e-24
        %v1685 = vmax.f32 %v1664, 1e-24
        %v1686 = vmax.f32 %v1666, 1e-24
        %v1687 = vmax.f32 %v1668, 1e-24
        %v1688 = vmax.f32 %v1670, 1e-24
        %v1689 = vmax.f32 %v1672, 1e-24
        %v1690 = vmax.f32 %v1674, 1e-24
        %v1691 = vrsqrt.pop %v1675
        %v1692 = vrsqrt.pop %v1676
        %v1693 = vrsqrt.pop %v1677
        %v1694 = vrsqrt.pop %v1678
        %v1695 = vrsqrt.pop %v1679
        %v1696 = vrsqrt.pop %v1680
        %v1697 = vrsqrt.pop %v1681
        %v1698 = vrsqrt.pop %v1682
        %v1699 = vrsqrt.pop %v1683
        %v1700 = vrsqrt.pop %v1684
        %v1701 = vrsqrt.pop %v1685
        %v1702 = vrsqrt.pop %v1686
        %v1703 = vrsqrt.pop %v1687
        %v1704 = vrsqrt.pop %v1688
        %v1705 = vrsqrt.pop %v1689
        %v1706 = vrsqrt.pop %v1690
        %v1707 = vmul.f32 %v1611, %v1691
        %v1708 = vmul.f32 %v1612, %v1692
        %v1709 = vmul.f32 %v1613, %v1693
        %v1710 = vmul.f32 %v1614, %v1694
        %v1711 = vmul.f32 %v1615, %v1695
        %v1712 = vmul.f32 %v1616, %v1696
        %v1713 = vmul.f32 %v1617, %v1697
        %v1714 = vmul.f32 %v1618, %v1698
        %v1715 = vmul.f32 %v1619, %v1699
        %v1716 = vmul.f32 %v1620, %v1700
        %v1717 = vmul.f32 %v1621, %v1701
        %v1718 = vmul.f32 %v1622, %v1702
        %v1719 = vmul.f32 %v1623, %v1703
        %v1720 = vmul.f32 %v1624, %v1704
        %v1721 = vmul.f32 %v1625, %v1705
        %v1722 = vmul.f32 %v1626, %v1706
        %1723 = vst [vmem:[%s319] sm:$0xff] %v1707
        %1724 = vst [vmem:[%s319 + $0x8] sm:$0xff] %v1708
        %1725 = vst [vmem:[%s319 + $0x10] sm:$0xff] %v1709
        %1726 = vst [vmem:[%s319 + $0x18] sm:$0xff] %v1710
        %1727 = vst [vmem:[%s319 + $0x20] sm:$0xff] %v1711
        %1728 = vst [vmem:[%s319 + $0x28] sm:$0xff] %v1712
        %1729 = vst [vmem:[%s319 + $0x30] sm:$0xff] %v1713
        %1730 = vst [vmem:[%s319 + $0x38] sm:$0xff] %v1714
        %1731 = vst [vmem:[%s319 + $0x40] sm:$0xff] %v1715
        %1732 = vst [vmem:[%s319 + $0x48] sm:$0xff] %v1716
        %1733 = vst [vmem:[%s319 + $0x50] sm:$0xff] %v1717
        %1734 = vst [vmem:[%s319 + $0x58] sm:$0xff] %v1718
        %1735 = vst [vmem:[%s319 + $0x60] sm:$0xff] %v1719
        %1736 = vst [vmem:[%s319 + $0x68] sm:$0xff] %v1720
        %1737 = vst [vmem:[%s319 + $0x70] sm:$0xff] %v1721
        %1738 = vst [vmem:[%s319 + $0x78] sm:$0xff] %v1722
      $region60: #{sage_decoder_forward.1} parent=51 // pred_fallthru
        _
      %s1739 = smul.u32 16, %s24
      %p1740 = scmp.lt.s32.totalorder %s1739, 15
      %s1741 = scalar_select %p1740, %s1739, 15
      %s1742 = smul.addr %s1741, 8
      %s1743 = scalar_lea.vmem %s8, %s1742
      // Predicated region
      $region61: #{sage_decoder_forward.1} parent=51 // pred_check
        %p1744 = pneg %p222
      $region62: #{sage_decoder_forward.1} parent=51 // pred_check_branch
        %1746 = sbr.rel (%p1744) target = $region64
      $region63: #{sage_decoder_forward.1} parent=51 // pred_region
        %s1747 = smul.u32 16, %s24
      $region64: #{sage_decoder_forward.1} parent=51 // pred_fallthru
        _
      // Predicated region
      $region65: #{sage_decoder_forward.1} parent=51 // pred_check
        %p1748 = pneg %p222
      $region66: #{sage_decoder_forward.1} parent=51 // pred_check_branch
        %1750 = sbr.rel (%p1748) target = $region68
      $region67: #{sage_decoder_forward.1} parent=51 // pred_region
        %s1751 = smul.u32 16, %s24
        %p1752 = scmp.lt.s32.totalorder %s1751, 15
        %s1753 = scalar_select %p1752, %s1751, 15
        %s1754 = smul.addr %s1753, 8
        %s1755 = scalar_lea.vmem %s8, %s1754
      $region68: #{sage_decoder_forward.1} parent=51 // pred_fallthru
        _
    $region52: #{sage_decoder_forward.1} parent=5 // pred_fallthru
      _
    %p1756 = scmp.le.s32.totalorder 2, %s14
    // Predicated region
    $region69: #{sage_decoder_forward.1} parent=5 // pred_check
      %p1757 = pneg %p1756
    $region70: #{sage_decoder_forward.1} parent=5 // pred_check_branch
      %1759 = sbr.rel (%p1757) target = $region72
    $region71: #{sage_decoder_forward.1} parent=5 // pred_region
      %s1760 = ssub.s32 %s14, 2
    $region72: #{sage_decoder_forward.1} parent=5 // pred_fallthru
      _
  $region6: #{sage_decoder_forward.1} parent=0 // loop_footer
    %s18 = sadd.s32 1, %s14
  $region7: #{sage_decoder_forward.1} parent=0 // loop_footer_branch
    %13 = sbr.rel target = $region3
  $region8: #{sage_decoder_forward.1} parent=0 // loop_exit
    _

</llo_original>
